<compile_context>
chip_gen: v5e
topology: v5e:2x2
jax: 0.10.0
libtpu: 0.0.40
codegen_flags: <defaults>
</compile_context>

<pallas_src>
import functools

import jax
import jax.numpy as jnp
import numpy as np
from jax.experimental import pallas as pl
from jax.experimental.pallas import tpu as pltpu


def _round_up(x, m):
    return ((x + m - 1) // m) * m


def _tiling(num_edges, tile_e, num_cores):
    """Clamp tile_e for small inputs and compute grid / padded edge count."""
    tile_e = max(16, min(tile_e, _round_up(pl.cdiv(num_edges, num_cores), 16)))
    steps = pl.cdiv(num_edges, num_cores * tile_e)
    e_pad = num_cores * steps * tile_e
    return tile_e, steps, e_pad


# ----------------------------------------------------------------------------
# Pallas kernel: fused TransE score + margin ranking loss (mean reduction)
# ----------------------------------------------------------------------------
def _margin_loss_kernel(ps_ref, pr_ref, pt_ref, ns_ref, nr_ref, nt_ref,
                        out_ref, acc_ref, *, total_edges, margin, inv_total,
                        tile_e, steps):
    c = pl.program_id(0)   # core split ("parallel")
    j = pl.program_id(1)   # edge-tile loop on this core ("arbitrary")

    @pl.when(j == 0)
    def _():
        acc_ref[...] = jnp.zeros_like(acc_ref)

    f32 = jnp.float32
    # positive / negative TransE residuals for this tile of edges (f32 math)
    pd = ps_ref[...].astype(f32) + pr_ref[...].astype(f32) - pt_ref[...].astype(f32)
    nd = ns_ref[...].astype(f32) + nr_ref[...].astype(f32) - nt_ref[...].astype(f32)

    pos_norm = jnp.sqrt(jnp.sum(pd * pd, axis=1, keepdims=True))   # [tile_e, 1]
    neg_norm = jnp.sqrt(jnp.sum(nd * nd, axis=1, keepdims=True))   # [tile_e, 1]

    # MarginRankingLoss(margin) with target y = -1:
    #   loss_i = max(0, -y*(pos_i - neg_i) + margin) = max(0, pos_i - neg_i + margin)
    hinge = jnp.maximum(pos_norm - neg_norm + margin, 0.0)

    # mask padded tail rows (global row id >= total_edges)
    start = (c * steps + j) * tile_e
    row_id = start + jax.lax.broadcasted_iota(jnp.int32, (tile_e, 1), 0)
    hinge = jnp.where(row_id < total_edges, hinge, 0.0)

    # scalar per-tile partial into a (1,1) accumulator
    acc_ref[...] += jnp.sum(hinge, keepdims=True)

    @pl.when(j == steps - 1)
    def _():
        # pre-scaled per-core partial, broadcast into a lane-dense output block
        out_ref[...] = jnp.broadcast_to(acc_ref[...] * inv_total, (1, 8, 128))


def margin_ranking_loss_pallas(pos_src, pos_rel, pos_tgt,
                               neg_src, neg_rel, neg_tgt,
                               *, total_edges, margin=1.0,
                               tile_e, steps, num_cores):
    e_pad, d = pos_src.shape
    assert d % 128 == 0, "feature dim must be a multiple of 128"
    assert e_pad == num_cores * steps * tile_e

    grid = (num_cores, steps)
    edge_spec = pl.BlockSpec((tile_e, d), lambda c, j: (c * steps + j, 0))
    out_spec = pl.BlockSpec((1, 8, 128), lambda c, j: (c, 0, 0))

    kernel = functools.partial(
        _margin_loss_kernel,
        total_edges=int(total_edges),
        margin=float(margin),
        inv_total=1.0 / float(total_edges),
        tile_e=tile_e,
        steps=steps,
    )

    out = pl.pallas_call(
        kernel,
        out_shape=jax.ShapeDtypeStruct((num_cores, 8, 128), jnp.float32),
        grid_spec=pltpu.PrefetchScalarGridSpec(
            num_scalar_prefetch=0,
            grid=grid,
            in_specs=[edge_spec] * 6,
            out_specs=out_spec,
            scratch_shapes=[pltpu.VMEM((1, 1), jnp.float32)],
        ),
        compiler_params=pltpu.CompilerParams(
            dimension_semantics=("parallel", "arbitrary"),
            vmem_limit_bytes=32 * 1024 * 1024,
        ),
    )(pos_src, pos_rel, pos_tgt, neg_src, neg_rel, neg_tgt)

    # sum the per-core partials (already divided by total_edges)
    return jnp.sum(out[:, 0, 0])


# ----------------------------------------------------------------------------
# Decoder module (JAX port of the PyTorch module)
# ----------------------------------------------------------------------------
class Decoder:
    def __init__(self, rel_size, feature_dim_size, e_size, key):
        self.rel_size = rel_size
        self.feature_dim_size = feature_dim_size
        self.e_size = e_size
        # nn.Embedding default init: N(0, 1)
        self.rel_weight = jax.random.normal(
            key, (rel_size, feature_dim_size), dtype=jnp.float32)

    # clone-and-corrupt negative sampling (rows 0 and 2 corrupted in halves)
    def sampling(self, pos_triplets, key):
        E = pos_triplets.shape[-1]
        split = E // 2
        k0, k1 = jax.random.split(key)
        id_max = self.e_size - 1                             # entities corrupted
        r0 = jax.random.randint(k0, (split,), 0, id_max,
                                dtype=pos_triplets.dtype)
        r0 = r0 + (r0 >= pos_triplets[0, :split]).astype(r0.dtype)
        r2 = jax.random.randint(k1, (E - split,), 0, id_max,
                                dtype=pos_triplets.dtype)
        r2 = r2 + (r2 >= pos_triplets[2, split:]).astype(r2.dtype)
        neg = pos_triplets.at[0, :split].set(r0)
        neg = neg.at[2, split:].set(r2)
        return neg

    # gather (torch.index_select / nn.Embedding lookup) + bf16 cast
    def _gather(self, node_embs, triplets):
        src = node_embs[triplets[0]].astype(jnp.bfloat16)        # [E_pad, D]
        rel = self.rel_weight[triplets[1]].astype(jnp.bfloat16)  # [E_pad, D]
        tgt = node_embs[triplets[2]].astype(jnp.bfloat16)        # [E_pad, D]
        return src, rel, tgt

    def _forward_parts(self, node_embs, edge_index, edge_type, sample_key,
                       *, tile_e=2048, num_cores=2):
        E = edge_index.shape[1]
        pos_triplets = jnp.concatenate(
            [edge_index[:1], edge_type, edge_index[1:]], axis=0)   # [3, E]
        neg_triplets = self.sampling(pos_triplets, sample_key)

        # pad index columns (with index 0) so gathered arrays tile evenly;
        # padded rows are masked out inside the kernel.
        tile_e, steps, e_pad = _tiling(E, tile_e, num_cores)
        pad = e_pad - E
        pos_p = jnp.pad(pos_triplets, ((0, 0), (0, pad)))
        neg_p = jnp.pad(neg_triplets, ((0, 0), (0, pad)))

        ps, pr, pt = self._gather(node_embs, pos_p)
        ns, nr, nt = self._gather(node_embs, neg_p)
        return (ps, pr, pt, ns, nr, nt), E, tile_e, steps, num_cores

    def forward(self, node_embs, edge_index, edge_type, sample_key,
                *, tile_e=2048, num_cores=2):
        parts, E, tile_e, steps, num_cores = self._forward_parts(
            node_embs, edge_index, edge_type, sample_key,
            tile_e=tile_e, num_cores=num_cores)
        return margin_ranking_loss_pallas(
            *parts, total_edges=E, margin=1.0,
            tile_e=tile_e, steps=steps, num_cores=num_cores)


# pure-JAX reference for correctness checking (same bf16 inputs, f32 math)
def _reference_loss(ps, pr, pt, ns, nr, nt, margin=1.0):
    ps, pr, pt, ns, nr, nt = (a.astype(jnp.float32)
                              for a in (ps, pr, pt, ns, nr, nt))
    pos = jnp.linalg.norm(ps + pr - pt, axis=1)
    neg = jnp.linalg.norm(ns + nr - nt, axis=1)
    return jnp.mean(jnp.maximum(pos - neg + margin, 0.0))


if __name__ == "__main__":
    key = jax.random.PRNGKey(0)
    k_emb, k_rel, k_src, k_tgt, k_type, k_samp = jax.random.split(key, 6)

    # small shapes consistent with the module (dim_size=128 kept;
    # e_size/r_size/batch shrunk; E deliberately not a power of 2 to exercise
    # the tail-masking path)
    N_NODES, N_REL, DIM, N_EDGES = 512, 64, 128, 500

    node_embs = jax.random.normal(k_emb, (N_NODES, DIM), dtype=jnp.float32)
    edge_index = jnp.stack([
        jax.random.randint(k_src, (N_EDGES,), 0, N_NODES, dtype=jnp.int32),
        jax.random.randint(k_tgt, (N_EDGES,), 0, N_NODES, dtype=jnp.int32),
    ], axis=0)                                               # [2, E]
    edge_type = jax.random.randint(k_type, (1, N_EDGES), 0, N_REL,
                                   dtype=jnp.int32)          # [1, E]

    decoder = Decoder(rel_size=N_REL, feature_dim_size=DIM,
                      e_size=N_NODES, key=k_rel)

    loss = decoder.forward(node_embs, edge_index, edge_type, k_samp)
    loss = jax.block_until_ready(loss)

    # correctness check against a pure-JAX reference (same sampling key,
    # same bf16 gathered inputs; only padded rows are excluded)
    parts, E, _, _, _ = decoder._forward_parts(
        node_embs, edge_index, edge_type, k_samp)
    ref = jax.block_until_ready(
        _reference_loss(*(p[:E] for p in parts), margin=1.0))
    np.testing.assert_allclose(np.asarray(loss), np.asarray(ref),
                               rtol=1e-4, atol=1e-4)

    print("KERNEL_OK")
</pallas_src>

<mosaic_0001>
module attributes {stable_mosaic.version = 11 : i64} {
  func.func @_margin_loss_kernel(%arg0: i32, %arg1: i32, %arg2: memref<256x128xbf16, #tpu.memory_space<vmem>>, %arg3: memref<256x128xbf16, #tpu.memory_space<vmem>>, %arg4: memref<256x128xbf16, #tpu.memory_space<vmem>>, %arg5: memref<256x128xbf16, #tpu.memory_space<vmem>>, %arg6: memref<256x128xbf16, #tpu.memory_space<vmem>>, %arg7: memref<256x128xbf16, #tpu.memory_space<vmem>>, %arg8: memref<1x8x128xf32, #tpu.memory_space<vmem>>, %arg9: memref<1x1xf32, #tpu.memory_space<vmem>>) attributes {dimension_semantics = [#tpu.dimension_semantics<parallel>, #tpu.dimension_semantics<arbitrary>], iteration_bounds = array<i64: 2, 1>, scalar_prefetch = 0 : i64, scratch_operands = 1 : i64, tpu.core_type = #tpu.core_type<tc>, window_params = [{transform_indices = @transform_0, window_bounds = array<i64: 256, 128>}, {transform_indices = @transform_1, window_bounds = array<i64: 256, 128>}, {transform_indices = @transform_2, window_bounds = array<i64: 256, 128>}, {transform_indices = @transform_3, window_bounds = array<i64: 256, 128>}, {transform_indices = @transform_4, window_bounds = array<i64: 256, 128>}, {transform_indices = @transform_5, window_bounds = array<i64: 256, 128>}, {transform_indices = @transform_6, window_bounds = array<i64: 1, 8, 128>}]} {
    %c0_i32 = arith.constant 0 : i32
    %0 = arith.cmpi eq, %arg1, %c0_i32 : i32
    %1 = arith.extui %0 : i1 to i32
    %c0_i32_0 = arith.constant 0 : i32
    %2 = arith.cmpi ne, %1, %c0_i32_0 : i32
    scf.if %2 {
      %cst_23 = arith.constant 0.000000e+00 : f32
      %53 = vector.broadcast %cst_23 : f32 to vector<1x1xf32>
      %c0_24 = arith.constant 0 : index
      %c0_25 = arith.constant 0 : index
      %54 = vector.load %arg9[%c0_24, %c0_25] : memref<1x1xf32, #tpu.memory_space<vmem>>, vector<1x1xf32>
      tpu.vector_store %arg9[%c0_24, %c0_25], %53 {strides = array<i32>} : memref<1x1xf32, #tpu.memory_space<vmem>>, vector<1x1xf32>,
    } else {
    }
    %c0 = arith.constant 0 : index
    %c0_1 = arith.constant 0 : index
    %3 = vector.load %arg2[%c0, %c0_1] : memref<256x128xbf16, #tpu.memory_space<vmem>>, vector<256x128xbf16>
    %4 = arith.extf %3 : vector<256x128xbf16> to vector<256x128xf32>
    %c0_2 = arith.constant 0 : index
    %c0_3 = arith.constant 0 : index
    %5 = vector.load %arg3[%c0_2, %c0_3] : memref<256x128xbf16, #tpu.memory_space<vmem>>, vector<256x128xbf16>
    %6 = arith.extf %5 : vector<256x128xbf16> to vector<256x128xf32>
    %7 = arith.addf %4, %6 : vector<256x128xf32>
    %c0_4 = arith.constant 0 : index
    %c0_5 = arith.constant 0 : index
    %8 = vector.load %arg4[%c0_4, %c0_5] : memref<256x128xbf16, #tpu.memory_space<vmem>>, vector<256x128xbf16>
    %9 = arith.extf %8 : vector<256x128xbf16> to vector<256x128xf32>
    %10 = arith.subf %7, %9 : vector<256x128xf32>
    %c0_6 = arith.constant 0 : index
    %c0_7 = arith.constant 0 : index
    %11 = vector.load %arg5[%c0_6, %c0_7] : memref<256x128xbf16, #tpu.memory_space<vmem>>, vector<256x128xbf16>
    %12 = arith.extf %11 : vector<256x128xbf16> to vector<256x128xf32>
    %c0_8 = arith.constant 0 : index
    %c0_9 = arith.constant 0 : index
    %13 = vector.load %arg6[%c0_8, %c0_9] : memref<256x128xbf16, #tpu.memory_space<vmem>>, vector<256x128xbf16>
    %14 = arith.extf %13 : vector<256x128xbf16> to vector<256x128xf32>
    %15 = arith.addf %12, %14 : vector<256x128xf32>
    %c0_10 = arith.constant 0 : index
    %c0_11 = arith.constant 0 : index
    %16 = vector.load %arg7[%c0_10, %c0_11] : memref<256x128xbf16, #tpu.memory_space<vmem>>, vector<256x128xbf16>
    %17 = arith.extf %16 : vector<256x128xbf16> to vector<256x128xf32>
    %18 = arith.subf %15, %17 : vector<256x128xf32>
    %19 = arith.mulf %10, %10 : vector<256x128xf32>
    %cst = arith.constant dense<0.000000e+00> : vector<256xf32>
    %20 = vector.multi_reduction <add>, %19, %cst [1] : vector<256x128xf32> to vector<256xf32>
    %21 = vector.shape_cast %20 : vector<256xf32> to vector<256x1xf32>
    %22 = math.sqrt %21 : vector<256x1xf32>
    %23 = arith.mulf %18, %18 : vector<256x128xf32>
    %cst_12 = arith.constant dense<0.000000e+00> : vector<256xf32>
    %24 = vector.multi_reduction <add>, %23, %cst_12 [1] : vector<256x128xf32> to vector<256xf32>
    %25 = vector.shape_cast %24 : vector<256xf32> to vector<256x1xf32>
    %26 = math.sqrt %25 : vector<256x1xf32>
    %27 = arith.subf %22, %26 : vector<256x1xf32>
    %cst_13 = arith.constant 1.000000e+00 : f32
    %28 = vector.broadcast %cst_13 : f32 to vector<256x1xf32>
    %29 = arith.addf %27, %28 : vector<256x1xf32>
    %cst_14 = arith.constant 0.000000e+00 : f32
    %30 = vector.broadcast %cst_14 : f32 to vector<256x1xf32>
    %31 = arith.maximumf %29, %30 : vector<256x1xf32>
    %c1_i32 = arith.constant 1 : i32
    %32 = arith.muli %arg0, %c1_i32 : i32
    %33 = arith.addi %32, %arg1 : i32
    %c256_i32 = arith.constant 256 : i32
    %34 = arith.muli %33, %c256_i32 : i32
    %35 = tpu.iota {dimensions = array<i32: 0>} : vector<256x1xi32>
    %36 = vector.broadcast %34 : i32 to vector<256x1xi32>
    %37 = arith.addi %36, %35 : vector<256x1xi32>
    %c500_i32 = arith.constant 500 : i32
    %38 = vector.broadcast %c500_i32 : i32 to vector<256x1xi32>
    %39 = arith.cmpi slt, %37, %38 : vector<256x1xi32>
    %cst_15 = arith.constant 0.000000e+00 : f32
    %40 = vector.broadcast %cst_15 : f32 to vector<256x1xf32>
    %41 = arith.select %39, %31, %40 : vector<256x1xi1>, vector<256x1xf32>
    %c0_16 = arith.constant 0 : index
    %c0_17 = arith.constant 0 : index
    %42 = vector.load %arg9[%c0_16, %c0_17] : memref<1x1xf32, #tpu.memory_space<vmem>>, vector<1x1xf32>
    %43 = vector.shape_cast %41 : vector<256x1xf32> to vector<1x256x1xf32>
    %cst_18 = arith.constant dense<0.000000e+00> : vector<1xf32>
    %44 = vector.multi_reduction <add>, %43, %cst_18 [1, 2] : vector<1x256x1xf32> to vector<1xf32>
    %45 = vector.shape_cast %44 : vector<1xf32> to vector<1x1x1xf32>
    %46 = vector.extract %45[0, 0, 0] : f32 from vector<1x1x1xf32>
    %47 = vector.broadcast %46 : f32 to vector<1x1xf32>
    %48 = arith.addf %42, %47 : vector<1x1xf32>
    %c0_19 = arith.constant 0 : index
    %c0_20 = arith.constant 0 : index
    %49 = vector.load %arg9[%c0_19, %c0_20] : memref<1x1xf32, #tpu.memory_space<vmem>>, vector<1x1xf32>
    tpu.vector_store %arg9[%c0_19, %c0_20], %48 {strides = array<i32>} : memref<1x1xf32, #tpu.memory_space<vmem>>, vector<1x1xf32>,
    %c0_i32_21 = arith.constant 0 : i32
    %50 = arith.cmpi eq, %arg1, %c0_i32_21 : i32
    %51 = arith.extui %50 : i1 to i32
    %c0_i32_22 = arith.constant 0 : i32
    %52 = arith.cmpi ne, %51, %c0_i32_22 : i32
    scf.if %52 {
      %c0_23 = arith.constant 0 : index
      %c0_24 = arith.constant 0 : index
      %53 = vector.load %arg9[%c0_23, %c0_24] : memref<1x1xf32, #tpu.memory_space<vmem>>, vector<1x1xf32>
      %cst_25 = arith.constant 2.000000e-03 : f32
      %54 = vector.broadcast %cst_25 : f32 to vector<1x1xf32>
      %55 = arith.mulf %53, %54 : vector<1x1xf32>
      %56 = vector.shape_cast %55 : vector<1x1xf32> to vector<1x1x1xf32>
      %57 = vector.broadcast %56 : vector<1x1x1xf32> to vector<1x8x128xf32>
      %c0_26 = arith.constant 0 : index
      %c0_27 = arith.constant 0 : index
      %c0_28 = arith.constant 0 : index
      %58 = vector.load %arg8[%c0_26, %c0_27, %c0_28] : memref<1x8x128xf32, #tpu.memory_space<vmem>>, vector<1x8x128xf32>
      tpu.vector_store %arg8[%c0_26, %c0_27, %c0_28], %57 {strides = array<i32>} : memref<1x8x128xf32, #tpu.memory_space<vmem>>, vector<1x8x128xf32>,
    } else {
    }
    return
  }
  func.func @transform_0(%arg0: i32, %arg1: i32) -> (i32, i32) {
    %c1_i32 = arith.constant 1 : i32
    %0 = arith.muli %arg0, %c1_i32 : i32
    %1 = arith.addi %0, %arg1 : i32
    %c0_i32 = arith.constant 0 : i32
    %c0_i32_0 = arith.constant 0 : i32
    return %1, %c0_i32 : i32, i32
  }
  func.func @transform_1(%arg0: i32, %arg1: i32) -> (i32, i32) {
    %c1_i32 = arith.constant 1 : i32
    %0 = arith.muli %arg0, %c1_i32 : i32
    %1 = arith.addi %0, %arg1 : i32
    %c0_i32 = arith.constant 0 : i32
    %c0_i32_0 = arith.constant 0 : i32
    return %1, %c0_i32 : i32, i32
  }
  func.func @transform_2(%arg0: i32, %arg1: i32) -> (i32, i32) {
    %c1_i32 = arith.constant 1 : i32
    %0 = arith.muli %arg0, %c1_i32 : i32
    %1 = arith.addi %0, %arg1 : i32
    %c0_i32 = arith.constant 0 : i32
    %c0_i32_0 = arith.constant 0 : i32
    return %1, %c0_i32 : i32, i32
  }
  func.func @transform_3(%arg0: i32, %arg1: i32) -> (i32, i32) {
    %c1_i32 = arith.constant 1 : i32
    %0 = arith.muli %arg0, %c1_i32 : i32
    %1 = arith.addi %0, %arg1 : i32
    %c0_i32 = arith.constant 0 : i32
    %c0_i32_0 = arith.constant 0 : i32
    return %1, %c0_i32 : i32, i32
  }
  func.func @transform_4(%arg0: i32, %arg1: i32) -> (i32, i32) {
    %c1_i32 = arith.constant 1 : i32
    %0 = arith.muli %arg0, %c1_i32 : i32
    %1 = arith.addi %0, %arg1 : i32
    %c0_i32 = arith.constant 0 : i32
    %c0_i32_0 = arith.constant 0 : i32
    return %1, %c0_i32 : i32, i32
  }
  func.func @transform_5(%arg0: i32, %arg1: i32) -> (i32, i32) {
    %c1_i32 = arith.constant 1 : i32
    %0 = arith.muli %arg0, %c1_i32 : i32
    %1 = arith.addi %0, %arg1 : i32
    %c0_i32 = arith.constant 0 : i32
    %c0_i32_0 = arith.constant 0 : i32
    return %1, %c0_i32 : i32, i32
  }
  func.func @transform_6(%arg0: i32, %arg1: i32) -> (i32, i32, i32) {
    %c0_i32 = arith.constant 0 : i32
    %c0_i32_0 = arith.constant 0 : i32
    %c0_i32_1 = arith.constant 0 : i32
    return %arg0, %c0_i32, %c0_i32_0 : i32, i32, i32
  }
}

</mosaic_0001>

<llo_original>
// kernel: tpu_custom_call.1
$region0: #{tpu_custom_call.1}
  #allocation0 [shape = 'u32[]', space=smem, size = 0x4, offset = 0x4, fixed_abs, tag = 'smem constant byte address 0x4 - core index']
  #allocation1 [shape = 'u32[72,128]{1,0:T(1,128)}', space=vmem, size = 0x9000, scoped, tag = 'internal scratch']
  #allocation2 [shape = 'f32[1,1]{1,0:T(1,128)}', space=vmem, size = 0x200, scoped, tag = 'scratch operand']
  %s0 = inlined_call_operand.hbm [shape: bf16[512,128], index: 0, kind: input, shape index: {}]
  %s1 = inlined_call_operand.hbm [shape: bf16[512,128], index: 1, kind: input, shape index: {}]
  %s2 = inlined_call_operand.hbm [shape: bf16[512,128], index: 2, kind: input, shape index: {}]
  %s3 = inlined_call_operand.hbm [shape: bf16[512,128], index: 3, kind: input, shape index: {}]
  %s4 = inlined_call_operand.hbm [shape: bf16[512,128], index: 4, kind: input, shape index: {}]
  %s5 = inlined_call_operand.hbm [shape: bf16[512,128], index: 5, kind: input, shape index: {}]
  %s6 = inlined_call_operand.hbm [shape: f32[2,8,128], index: 6, kind: output, shape index: {}]
  %s7 = sld [smem:[#allocation0]]
  $region89: #{tpu_custom_call.1} parent=0
    _
  %s9 = ssub.s32 1, %s7
  %s10 = scalar_select 0, %s9, %s7
  $region1: #{tpu_custom_call.1} parent=0
    #allocation3 [shape = 'u8[131072]{0}', space=vmem, size = 0x20000, scoped, tag = 'input window, operand 0']
    #allocation4 [shape = 's32[2]{0}', space=sflag, size = 0x8, scoped, tag = 'scoped memory for tpu_custom_call.1']
    #allocation5 [shape = 's32[2]{0}', space=sflag, size = 0x8, scoped, tag = 'scoped memory for tpu_custom_call.1']
    #allocation6 [shape = 'u8[131072]{0}', space=vmem, size = 0x20000, scoped, tag = 'input window, operand 1']
    #allocation7 [shape = 's32[2]{0}', space=sflag, size = 0x8, scoped, tag = 'scoped memory for tpu_custom_call.1']
    #allocation8 [shape = 'u8[131072]{0}', space=vmem, size = 0x20000, scoped, tag = 'input window, operand 2']
    #allocation9 [shape = 'u8[131072]{0}', space=vmem, size = 0x20000, scoped, tag = 'input window, operand 3']
    #allocation10 [shape = 's32[2]{0}', space=sflag, size = 0x8, scoped, tag = 'scoped memory for tpu_custom_call.1']
    #allocation11 [shape = 'u8[131072]{0}', space=vmem, size = 0x20000, scoped, tag = 'input window, operand 4']
    #allocation12 [shape = 'u8[131072]{0}', space=vmem, size = 0x20000, scoped, tag = 'input window, operand 5']
    #allocation13 [shape = 's32[2]{0}', space=sflag, size = 0x8, scoped, tag = 'scoped memory for tpu_custom_call.1']
    #allocation14 [shape = 'u8[8192]{0}', space=vmem, size = 0x2000, scoped, tag = 'output window, operand 0']
    %11 = vsyncpa [#allocation4], 0
    %s12 = scalar_lea.sflag [#allocation4], 1
    %13 = vsyncpa %s12, 0
    %14 = vsyncpa [#allocation7], 0
    %s15 = scalar_lea.sflag [#allocation7], 1
    %16 = vsyncpa %s15, 0
    %17 = vsyncpa [#allocation10], 0
    %s18 = scalar_lea.sflag [#allocation10], 1
    %19 = vsyncpa %s18, 0
    %20 = vsyncpa [#allocation13], 0
    %s21 = scalar_lea.sflag [#allocation13], 1
    %22 = vsyncpa %s21, 0
    %23 = vsyncpa [#allocation5], 0
    %s24 = scalar_lea.sflag [#allocation5], 1
    %25 = vsyncpa %s24, 0
    loop: start=0, step=1, limit=4
    $region2: #{tpu_custom_call.1} parent=1 // loop_pre_header
      _
    $region3: #{tpu_custom_call.1} parent=1 // loop_header
      %s27 = sphi 0, %s31
      %p28 = scmp.ge.s32.totalorder %s27, 4
      %s34 = sphi 0, %s46
      %s35 = sphi 0, %s42
      %s36 = sphi 0, %s34
      %s37 = sphi 0, %s35
      %s38 = sphi 0, %s36
      %s39 = sphi 0, %s37
      %s51 = sphi 0, %s53
      %s54 = sphi 0, %s51
      %s55 = sphi 0, %s54
      %s71 = sphi 0, %s55
      %s79 = sphi 0, %s81
      %s82 = sphi 0, %s79
      %s83 = sphi 0, %s82
      %s99 = sphi 0, %s83
      %s107 = sphi 0, %s109
      %s110 = sphi 0, %s107
      %s111 = sphi 0, %s110
      %s127 = sphi 0, %s111
      %s135 = sphi 0, %s137
      %s138 = sphi 0, %s135
      %s139 = sphi 0, %s138
      %s155 = sphi 0, %s139
      %s163 = sphi 0, %s165
      %s166 = sphi 0, %s163
      %s167 = sphi 0, %s166
      %s183 = sphi 0, %s167
      %s191 = sphi 0, %s193
      %s194 = sphi 0, %s191
      %s195 = sphi 0, %s194
      %s211 = sphi 0, %s195
      %s217 = sphi 0, %s219
      %s220 = sphi 0, %s217
      %s221 = sphi 0, %s220
      %s237 = sphi 0, %s221
    $region4: #{tpu_custom_call.1} parent=1 // loop_header_branch
      %30 = sbr.rel (%p28) target = $region8
    $region5: #{tpu_custom_call.1} parent=1 // loop_body
      %s32 = ssub.s32 %s27, 1
      %s33 = ssub.s32 %s27, 2
      %s40 = sadd.s32 1, %s35
      %p41 = scmp.ge.s32.totalorder %s40, 1
      %s42 = scalar_select %p41, 0, %s40
      %s43 = sadd.s32 1, %s34
      %s44 = scalar_select %p41, %s43, %s34
      %p45 = scmp.ge.s32.totalorder %s44, 2
      %s46 = scalar_select %p45, 0, %s44
      %s47 = sadd.s32 %s34, %s35
      %s48 = sadd.s32 %s46, %s42
      %s49 = ssub.s32 %s47, %s48
      %p50 = scmp.eq.s32.totalorder %s49, 0
      %s52 = sadd.s32 %s51, 1
      %s53 = scalar_select %p50, %s51, %s52
      %p56 = pneg %p50
      %p57 = scmp.eq.s32.totalorder %s27, 1
      %p58 = por %p56, %p57
      %p59 = scmp.ne.s32.totalorder %s51, %s54
      %p60 = scmp.eq.s32.totalorder %s27, 0
      %p61 = por %p59, %p60
      %p62 = scmp.ne.s32.totalorder %s51, %s54
      %p63 = scmp.eq.s32.totalorder %s32, 1
      %p64 = por %p62, %p63
      %p65 = scmp.ne.s32.totalorder %s54, %s55
      %p66 = scmp.eq.s32.totalorder %s32, 0
      %p67 = por %p65, %p66
      %p68 = scmp.ne.s32.totalorder %s54, %s55
      %p69 = scmp.eq.s32.totalorder %s33, 1
      %p70 = por %p68, %p69
      %p72 = scmp.ne.s32.totalorder %s55, %s71
      %p73 = scmp.eq.s32.totalorder %s33, 0
      %p74 = por %p72, %p73
      %s75 = sadd.s32 %s34, %s35
      %s76 = sadd.s32 %s46, %s42
      %s77 = ssub.s32 %s75, %s76
      %p78 = scmp.eq.s32.totalorder %s77, 0
      %s80 = sadd.s32 %s79, 1
      %s81 = scalar_select %p78, %s79, %s80
      %p84 = pneg %p78
      %p85 = scmp.eq.s32.totalorder %s27, 1
      %p86 = por %p84, %p85
      %p87 = scmp.ne.s32.totalorder %s79, %s82
      %p88 = scmp.eq.s32.totalorder %s27, 0
      %p89 = por %p87, %p88
      %p90 = scmp.ne.s32.totalorder %s79, %s82
      %p91 = scmp.eq.s32.totalorder %s32, 1
      %p92 = por %p90, %p91
      %p93 = scmp.ne.s32.totalorder %s82, %s83
      %p94 = scmp.eq.s32.totalorder %s32, 0
      %p95 = por %p93, %p94
      %p96 = scmp.ne.s32.totalorder %s82, %s83
      %p97 = scmp.eq.s32.totalorder %s33, 1
      %p98 = por %p96, %p97
      %p100 = scmp.ne.s32.totalorder %s83, %s99
      %p101 = scmp.eq.s32.totalorder %s33, 0
      %p102 = por %p100, %p101
      %s103 = sadd.s32 %s34, %s35
      %s104 = sadd.s32 %s46, %s42
      %s105 = ssub.s32 %s103, %s104
      %p106 = scmp.eq.s32.totalorder %s105, 0
      %s108 = sadd.s32 %s107, 1
      %s109 = scalar_select %p106, %s107, %s108
      %p112 = pneg %p106
      %p113 = scmp.eq.s32.totalorder %s27, 1
      %p114 = por %p112, %p113
      %p115 = scmp.ne.s32.totalorder %s107, %s110
      %p116 = scmp.eq.s32.totalorder %s27, 0
      %p117 = por %p115, %p116
      %p118 = scmp.ne.s32.totalorder %s107, %s110
      %p119 = scmp.eq.s32.totalorder %s32, 1
      %p120 = por %p118, %p119
      %p121 = scmp.ne.s32.totalorder %s110, %s111
      %p122 = scmp.eq.s32.totalorder %s32, 0
      %p123 = por %p121, %p122
      %p124 = scmp.ne.s32.totalorder %s110, %s111
      %p125 = scmp.eq.s32.totalorder %s33, 1
      %p126 = por %p124, %p125
      %p128 = scmp.ne.s32.totalorder %s111, %s127
      %p129 = scmp.eq.s32.totalorder %s33, 0
      %p130 = por %p128, %p129
      %s131 = sadd.s32 %s34, %s35
      %s132 = sadd.s32 %s46, %s42
      %s133 = ssub.s32 %s131, %s132
      %p134 = scmp.eq.s32.totalorder %s133, 0
      %s136 = sadd.s32 %s135, 1
      %s137 = scalar_select %p134, %s135, %s136
      %p140 = pneg %p134
      %p141 = scmp.eq.s32.totalorder %s27, 1
      %p142 = por %p140, %p141
      %p143 = scmp.ne.s32.totalorder %s135, %s138
      %p144 = scmp.eq.s32.totalorder %s27, 0
      %p145 = por %p143, %p144
      %p146 = scmp.ne.s32.totalorder %s135, %s138
      %p147 = scmp.eq.s32.totalorder %s32, 1
      %p148 = por %p146, %p147
      %p149 = scmp.ne.s32.totalorder %s138, %s139
      %p150 = scmp.eq.s32.totalorder %s32, 0
      %p151 = por %p149, %p150
      %p152 = scmp.ne.s32.totalorder %s138, %s139
      %p153 = scmp.eq.s32.totalorder %s33, 1
      %p154 = por %p152, %p153
      %p156 = scmp.ne.s32.totalorder %s139, %s155
      %p157 = scmp.eq.s32.totalorder %s33, 0
      %p158 = por %p156, %p157
      %s159 = sadd.s32 %s34, %s35
      %s160 = sadd.s32 %s46, %s42
      %s161 = ssub.s32 %s159, %s160
      %p162 = scmp.eq.s32.totalorder %s161, 0
      %s164 = sadd.s32 %s163, 1
      %s165 = scalar_select %p162, %s163, %s164
      %p168 = pneg %p162
      %p169 = scmp.eq.s32.totalorder %s27, 1
      %p170 = por %p168, %p169
      %p171 = scmp.ne.s32.totalorder %s163, %s166
      %p172 = scmp.eq.s32.totalorder %s27, 0
      %p173 = por %p171, %p172
      %p174 = scmp.ne.s32.totalorder %s163, %s166
      %p175 = scmp.eq.s32.totalorder %s32, 1
      %p176 = por %p174, %p175
      %p177 = scmp.ne.s32.totalorder %s166, %s167
      %p178 = scmp.eq.s32.totalorder %s32, 0
      %p179 = por %p177, %p178
      %p180 = scmp.ne.s32.totalorder %s166, %s167
      %p181 = scmp.eq.s32.totalorder %s33, 1
      %p182 = por %p180, %p181
      %p184 = scmp.ne.s32.totalorder %s167, %s183
      %p185 = scmp.eq.s32.totalorder %s33, 0
      %p186 = por %p184, %p185
      %s187 = sadd.s32 %s34, %s35
      %s188 = sadd.s32 %s46, %s42
      %s189 = ssub.s32 %s187, %s188
      %p190 = scmp.eq.s32.totalorder %s189, 0
      %s192 = sadd.s32 %s191, 1
      %s193 = scalar_select %p190, %s191, %s192
      %p196 = pneg %p190
      %p197 = scmp.eq.s32.totalorder %s27, 1
      %p198 = por %p196, %p197
      %p199 = scmp.ne.s32.totalorder %s191, %s194
      %p200 = scmp.eq.s32.totalorder %s27, 0
      %p201 = por %p199, %p200
      %p202 = scmp.ne.s32.totalorder %s191, %s194
      %p203 = scmp.eq.s32.totalorder %s32, 1
      %p204 = por %p202, %p203
      %p205 = scmp.ne.s32.totalorder %s194, %s195
      %p206 = scmp.eq.s32.totalorder %s32, 0
      %p207 = por %p205, %p206
      %p208 = scmp.ne.s32.totalorder %s194, %s195
      %p209 = scmp.eq.s32.totalorder %s33, 1
      %p210 = por %p208, %p209
      %p212 = scmp.ne.s32.totalorder %s195, %s211
      %p213 = scmp.eq.s32.totalorder %s33, 0
      %p214 = por %p212, %p213
      %s215 = ssub.s32 %s34, %s46
      %p216 = scmp.eq.s32.totalorder %s215, 0
      %s218 = sadd.s32 %s217, 1
      %s219 = scalar_select %p216, %s217, %s218
      %p222 = pneg %p216
      %p223 = scmp.eq.s32.totalorder %s27, 1
      %p224 = por %p222, %p223
      %p225 = scmp.ne.s32.totalorder %s217, %s220
      %p226 = scmp.eq.s32.totalorder %s27, 0
      %p227 = por %p225, %p226
      %p228 = scmp.ne.s32.totalorder %s217, %s220
      %p229 = scmp.eq.s32.totalorder %s32, 1
      %p230 = por %p228, %p229
      %p231 = scmp.ne.s32.totalorder %s220, %s221
      %p232 = scmp.eq.s32.totalorder %s32, 0
      %p233 = por %p231, %p232
      %p234 = scmp.ne.s32.totalorder %s220, %s221
      %p235 = scmp.eq.s32.totalorder %s33, 1
      %p236 = por %p234, %p235
      %p238 = scmp.ne.s32.totalorder %s221, %s237
      %p239 = scmp.eq.s32.totalorder %s33, 0
      %p240 = por %p238, %p239
      %p241 = scmp.le.s32.totalorder 1, %s27
      %p242 = scmp.lt.s32.totalorder %s27, 3
      %p243 = pnand %p241, %p242
      %p244 = pneg %p243
      // Predicated region
      $region9: #{tpu_custom_call.1} parent=5 // pred_check
        _
      $region10: #{tpu_custom_call.1} parent=5 // pred_check_branch
        %246 = sbr.rel (%p243) target = $region12
      $region11: #{tpu_custom_call.1} parent=5 // pred_region
        %s247 = ssub.s32 %s27, 1
      $region12: #{tpu_custom_call.1} parent=5 // pred_fallthru
        _
      %p248 = scmp.lt.s32.totalorder %s27, 2
      // Predicated region
      $region13: #{tpu_custom_call.1} parent=5 // pred_check
        %p249 = pneg %p248
      $region14: #{tpu_custom_call.1} parent=5 // pred_check_branch
        %251 = sbr.rel (%p249) target = $region16
      $region15: #{tpu_custom_call.1} parent=5 // pred_region
        // Predicated region
        $region17: #{tpu_custom_call.1} parent=15 // pred_check
          %p252 = pneg %p61
        $region18: #{tpu_custom_call.1} parent=15 // pred_check_branch
          %254 = sbr.rel (%p252) target = $region20
        $region19: #{tpu_custom_call.1} parent=15 // pred_region
          %s255 = sand.u32 %s51, 1
          %s256 = scalar_lea.sflag [#allocation4], %s255
          %s257 = sand.u32 %s51, 1
          %s258 = smul.addr %s257, 128
          %s259 = scalar_lea.vmem [#allocation3], %s258
          %s260 = sadd.s32 %s34, %s35
          %s261 = smul.u32 32, %s260
          %263 = vsyncadd %s256, 0
          %s264 = smul.addr %s261, 4
          %s265 = scalar_lea.hbm %s0, %s264
          %s266 = sshll.u32 %s265, 4
          %s267 = int_to_ptr.hbm [resolvable:$true] %s266
          %s268 = sshll.u32 %s259, 4
          %s269 = int_to_ptr.vmem [resolvable:$true] %s268
          %274 = dma.hbm_to_vmem [thread:$0]  %s267, 2048, %s269, %s256, 64, 64, 4
        $region20: #{tpu_custom_call.1} parent=15 // pred_fallthru
          _
        // Predicated region
        $region21: #{tpu_custom_call.1} parent=15 // pred_check
          %p275 = pneg %p89
        $region22: #{tpu_custom_call.1} parent=15 // pred_check_branch
          %277 = sbr.rel (%p275) target = $region24
        $region23: #{tpu_custom_call.1} parent=15 // pred_region
          %s278 = sand.u32 %s27, 1
          %s279 = scalar_lea.sflag [#allocation7], %s278
          %s280 = sand.u32 %s79, 1
          %s281 = smul.addr %s280, 128
          %s282 = scalar_lea.vmem [#allocation6], %s281
          %s283 = sadd.s32 %s34, %s35
          %s284 = smul.u32 32, %s283
          %286 = vsyncadd %s279, 0
          %s287 = smul.addr %s284, 4
          %s288 = scalar_lea.hbm %s1, %s287
          %s289 = sshll.u32 %s288, 4
          %s290 = int_to_ptr.hbm [resolvable:$true] %s289
          %s291 = sshll.u32 %s282, 4
          %s292 = int_to_ptr.vmem [resolvable:$true] %s291
          %297 = dma.hbm_to_vmem [thread:$0]  %s290, 2048, %s292, %s279, 64, 64, 4
        $region24: #{tpu_custom_call.1} parent=15 // pred_fallthru
          _
        // Predicated region
        $region25: #{tpu_custom_call.1} parent=15 // pred_check
          %p298 = pneg %p117
        $region26: #{tpu_custom_call.1} parent=15 // pred_check_branch
          %300 = sbr.rel (%p298) target = $region28
        $region27: #{tpu_custom_call.1} parent=15 // pred_region
          %s301 = sand.u32 %s27, 1
          %s302 = scalar_lea.sflag [#allocation7], %s301
          %s303 = sand.u32 %s107, 1
          %s304 = smul.addr %s303, 128
          %s305 = scalar_lea.vmem [#allocation8], %s304
          %s306 = sadd.s32 %s34, %s35
          %s307 = smul.u32 32, %s306
          %309 = vsyncadd %s302, 0
          %s310 = smul.addr %s307, 4
          %s311 = scalar_lea.hbm %s2, %s310
          %s312 = sshll.u32 %s311, 4
          %s313 = int_to_ptr.hbm [resolvable:$true] %s312
          %s314 = sshll.u32 %s305, 4
          %s315 = int_to_ptr.vmem [resolvable:$true] %s314
          %320 = dma.hbm_to_vmem [thread:$0]  %s313, 2048, %s315, %s302, 64, 64, 4
        $region28: #{tpu_custom_call.1} parent=15 // pred_fallthru
          _
        // Predicated region
        $region29: #{tpu_custom_call.1} parent=15 // pred_check
          %p321 = pneg %p145
        $region30: #{tpu_custom_call.1} parent=15 // pred_check_branch
          %323 = sbr.rel (%p321) target = $region32
        $region31: #{tpu_custom_call.1} parent=15 // pred_region
          %s324 = sand.u32 %s27, 1
          %s325 = scalar_lea.sflag [#allocation10], %s324
          %s326 = sand.u32 %s135, 1
          %s327 = smul.addr %s326, 128
          %s328 = scalar_lea.vmem [#allocation9], %s327
          %s329 = sadd.s32 %s34, %s35
          %s330 = smul.u32 32, %s329
          %332 = vsyncadd %s325, 0
          %s333 = smul.addr %s330, 4
          %s334 = scalar_lea.hbm %s3, %s333
          %s335 = sshll.u32 %s334, 4
          %s336 = int_to_ptr.hbm [resolvable:$true] %s335
          %s337 = sshll.u32 %s328, 4
          %s338 = int_to_ptr.vmem [resolvable:$true] %s337
          %343 = dma.hbm_to_vmem [thread:$0]  %s336, 2048, %s338, %s325, 64, 64, 4
        $region32: #{tpu_custom_call.1} parent=15 // pred_fallthru
          _
        // Predicated region
        $region33: #{tpu_custom_call.1} parent=15 // pred_check
          %p344 = pneg %p173
        $region34: #{tpu_custom_call.1} parent=15 // pred_check_branch
          %346 = sbr.rel (%p344) target = $region36
        $region35: #{tpu_custom_call.1} parent=15 // pred_region
          %s347 = sand.u32 %s27, 1
          %s348 = scalar_lea.sflag [#allocation10], %s347
          %s349 = sand.u32 %s163, 1
          %s350 = smul.addr %s349, 128
          %s351 = scalar_lea.vmem [#allocation11], %s350
          %s352 = sadd.s32 %s34, %s35
          %s353 = smul.u32 32, %s352
          %355 = vsyncadd %s348, 0
          %s356 = smul.addr %s353, 4
          %s357 = scalar_lea.hbm %s4, %s356
          %s358 = sshll.u32 %s357, 4
          %s359 = int_to_ptr.hbm [resolvable:$true] %s358
          %s360 = sshll.u32 %s351, 4
          %s361 = int_to_ptr.vmem [resolvable:$true] %s360
          %366 = dma.hbm_to_vmem [thread:$0]  %s359, 2048, %s361, %s348, 64, 64, 4
        $region36: #{tpu_custom_call.1} parent=15 // pred_fallthru
          _
        // Predicated region
        $region37: #{tpu_custom_call.1} parent=15 // pred_check
          %p367 = pneg %p201
        $region38: #{tpu_custom_call.1} parent=15 // pred_check_branch
          %369 = sbr.rel (%p367) target = $region40
        $region39: #{tpu_custom_call.1} parent=15 // pred_region
          %s370 = sand.u32 %s191, 1
          %s371 = scalar_lea.sflag [#allocation13], %s370
          %s372 = sand.u32 %s191, 1
          %s373 = smul.addr %s372, 128
          %s374 = scalar_lea.vmem [#allocation12], %s373
          %s375 = sadd.s32 %s34, %s35
          %s376 = smul.u32 32, %s375
          %378 = vsyncadd %s371, 0
          %s379 = smul.addr %s376, 4
          %s380 = scalar_lea.hbm %s5, %s379
          %s381 = sshll.u32 %s380, 4
          %s382 = int_to_ptr.hbm [resolvable:$true] %s381
          %s383 = sshll.u32 %s374, 4
          %s384 = int_to_ptr.vmem [resolvable:$true] %s383
          %389 = dma.hbm_to_vmem [thread:$0]  %s382, 2048, %s384, %s371, 64, 64, 4
        $region40: #{tpu_custom_call.1} parent=15 // pred_fallthru
          _
      $region16: #{tpu_custom_call.1} parent=5 // pred_fallthru
        _
      %p390 = scmp.le.s32.totalorder 1, %s27
      %p391 = scmp.lt.s32.totalorder %s27, 3
      %p392 = pnand %p390, %p391
      %p393 = pneg %p392
      // Predicated region
      $region41: #{tpu_custom_call.1} parent=5 // pred_check
        _
      $region42: #{tpu_custom_call.1} parent=5 // pred_check_branch
        %395 = sbr.rel (%p392) target = $region44
      $region43: #{tpu_custom_call.1} parent=5 // pred_region
        %s396 = ssub.s32 %s27, 1
        %s397 = sand.u32 %s54, 1
        %s398 = scalar_lea.sflag [#allocation4], %s397
        %s399 = sand.u32 %s54, 1
        %s400 = smul.addr %s399, 128
        %s401 = scalar_lea.vmem [#allocation3], %s400
        // Predicated region
        $region45: #{tpu_custom_call.1} parent=43 // pred_check
          %p402 = pneg %p67
        $region46: #{tpu_custom_call.1} parent=43 // pred_check_branch
          %404 = sbr.rel (%p402) target = $region48
        $region47: #{tpu_custom_call.1} parent=43 // pred_region
          %406 = dma.done %s398, 2048
        $region48: #{tpu_custom_call.1} parent=43 // pred_fallthru
          _
        %s407 = sand.u32 %s32, 1
        %s408 = scalar_lea.sflag [#allocation7], %s407
        %s409 = sand.u32 %s82, 1
        %s410 = smul.addr %s409, 128
        %s411 = scalar_lea.vmem [#allocation6], %s410
        // Predicated region
        $region49: #{tpu_custom_call.1} parent=43 // pred_check
          %p412 = pneg %p95
        $region50: #{tpu_custom_call.1} parent=43 // pred_check_branch
          %414 = sbr.rel (%p412) target = $region52
        $region51: #{tpu_custom_call.1} parent=43 // pred_region
          %416 = dma.done %s408, 2048
        $region52: #{tpu_custom_call.1} parent=43 // pred_fallthru
          _
        %s417 = sand.u32 %s32, 1
        %s418 = scalar_lea.sflag [#allocation7], %s417
        %s419 = sand.u32 %s110, 1
        %s420 = smul.addr %s419, 128
        %s421 = scalar_lea.vmem [#allocation8], %s420
        // Predicated region
        $region53: #{tpu_custom_call.1} parent=43 // pred_check
          %p422 = pneg %p123
        $region54: #{tpu_custom_call.1} parent=43 // pred_check_branch
          %424 = sbr.rel (%p422) target = $region56
        $region55: #{tpu_custom_call.1} parent=43 // pred_region
          %426 = dma.done %s418, 2048
        $region56: #{tpu_custom_call.1} parent=43 // pred_fallthru
          _
        %s427 = sand.u32 %s32, 1
        %s428 = scalar_lea.sflag [#allocation10], %s427
        %s429 = sand.u32 %s138, 1
        %s430 = smul.addr %s429, 128
        %s431 = scalar_lea.vmem [#allocation9], %s430
        // Predicated region
        $region57: #{tpu_custom_call.1} parent=43 // pred_check
          %p432 = pneg %p151
        $region58: #{tpu_custom_call.1} parent=43 // pred_check_branch
          %434 = sbr.rel (%p432) target = $region60
        $region59: #{tpu_custom_call.1} parent=43 // pred_region
          %436 = dma.done %s428, 2048
        $region60: #{tpu_custom_call.1} parent=43 // pred_fallthru
          _
        %s437 = sand.u32 %s32, 1
        %s438 = scalar_lea.sflag [#allocation10], %s437
        %s439 = sand.u32 %s166, 1
        %s440 = smul.addr %s439, 128
        %s441 = scalar_lea.vmem [#allocation11], %s440
        // Predicated region
        $region61: #{tpu_custom_call.1} parent=43 // pred_check
          %p442 = pneg %p179
        $region62: #{tpu_custom_call.1} parent=43 // pred_check_branch
          %444 = sbr.rel (%p442) target = $region64
        $region63: #{tpu_custom_call.1} parent=43 // pred_region
          %446 = dma.done %s438, 2048
        $region64: #{tpu_custom_call.1} parent=43 // pred_fallthru
          _
        %s447 = sand.u32 %s194, 1
        %s448 = scalar_lea.sflag [#allocation13], %s447
        %s449 = sand.u32 %s194, 1
        %s450 = smul.addr %s449, 128
        %s451 = scalar_lea.vmem [#allocation12], %s450
        // Predicated region
        $region65: #{tpu_custom_call.1} parent=43 // pred_check
          %p452 = pneg %p207
        $region66: #{tpu_custom_call.1} parent=43 // pred_check_branch
          %454 = sbr.rel (%p452) target = $region68
        $region67: #{tpu_custom_call.1} parent=43 // pred_region
          %456 = dma.done %s448, 2048
        $region68: #{tpu_custom_call.1} parent=43 // pred_fallthru
          _
        %s457 = sand.u32 %s54, 1
        %s458 = scalar_lea.sflag [#allocation4], %s457
        %s459 = sand.u32 %s54, 1
        %s460 = smul.addr %s459, 128
        %s461 = scalar_lea.vmem [#allocation3], %s460
        %p462 = pneg %p67
        %p463 = pneg %p64
        %s464 = sand.u32 %s32, 1
        %s465 = scalar_lea.sflag [#allocation7], %s464
        %s466 = sand.u32 %s82, 1
        %s467 = smul.addr %s466, 128
        %s468 = scalar_lea.vmem [#allocation6], %s467
        %p469 = pneg %p95
        %p470 = pneg %p92
        %s471 = sand.u32 %s32, 1
        %s472 = scalar_lea.sflag [#allocation7], %s471
        %s473 = sand.u32 %s110, 1
        %s474 = smul.addr %s473, 128
        %s475 = scalar_lea.vmem [#allocation8], %s474
        %p476 = pneg %p123
        %p477 = pneg %p120
        %s478 = sand.u32 %s32, 1
        %s479 = scalar_lea.sflag [#allocation10], %s478
        %s480 = sand.u32 %s138, 1
        %s481 = smul.addr %s480, 128
        %s482 = scalar_lea.vmem [#allocation9], %s481
        %p483 = pneg %p151
        %p484 = pneg %p148
        %s485 = sand.u32 %s32, 1
        %s486 = scalar_lea.sflag [#allocation10], %s485
        %s487 = sand.u32 %s166, 1
        %s488 = smul.addr %s487, 128
        %s489 = scalar_lea.vmem [#allocation11], %s488
        %p490 = pneg %p179
        %p491 = pneg %p176
        %s492 = sand.u32 %s194, 1
        %s493 = scalar_lea.sflag [#allocation13], %s492
        %s494 = sand.u32 %s194, 1
        %s495 = smul.addr %s494, 128
        %s496 = scalar_lea.vmem [#allocation12], %s495
        %p497 = pneg %p207
        %p498 = pneg %p204
        %p499 = pneg %p233
        %p500 = pneg %p230
        %s501 = sand.u32 %s220, 1
        %s502 = scalar_lea.sflag [#allocation5], %s501
        %s503 = sand.u32 %s220, 1
        %s504 = smul.addr %s503, 8
        %s505 = scalar_lea.vmem [#allocation14], %s504
        %s506 = sadd.s32 %s36, %s37
        %s507 = smul.u32 32, %s506
        %s508 = sadd.s32 %s36, %s37
        %s509 = smul.u32 32, %s508
        %s510 = sadd.s32 %s36, %s37
        %s511 = smul.u32 32, %s510
        %s512 = sadd.s32 %s36, %s37
        %s513 = smul.u32 32, %s512
        %s514 = sadd.s32 %s36, %s37
        %s515 = smul.u32 32, %s514
        %s516 = sadd.s32 %s36, %s37
        %s517 = smul.u32 32, %s516
        %p518 = scmp.eq.s32.totalorder %s37, 0
        // Predicated region
        $region69: #{tpu_custom_call.1} parent=43 // pred_check
          %p519 = pneg %p518
        $region70: #{tpu_custom_call.1} parent=43 // pred_check_branch
          %521 = sbr.rel (%p519) target = $region72
        $region71: #{tpu_custom_call.1} parent=43 // pred_region
          %vm522 = vcmask 0
          %523 = vst.msk [vmem:[#allocation2] sm:$0x1] %vm522, 0.0
        $region72: #{tpu_custom_call.1} parent=43 // pred_fallthru
          _
        %v524 = vld [vmem:[%s401] sm:$0xf]
        %v525 = vld [vmem:[%s401 + $0x4] sm:$0xf]
        %v526 = vld [vmem:[%s401 + $0x8] sm:$0xf]
        %v527 = vld [vmem:[%s401 + $0xc] sm:$0xf]
        %v528 = vld [vmem:[%s401 + $0x10] sm:$0xf]
        %v529 = vld [vmem:[%s401 + $0x14] sm:$0xf]
        %v530 = vld [vmem:[%s401 + $0x18] sm:$0xf]
        %v531 = vld [vmem:[%s401 + $0x1c] sm:$0xf]
        %v532 = vld [vmem:[%s401 + $0x20] sm:$0xf]
        %v533 = vld [vmem:[%s401 + $0x24] sm:$0xf]
        %v534 = vld [vmem:[%s401 + $0x28] sm:$0xf]
        %v535 = vld [vmem:[%s401 + $0x2c] sm:$0xf]
        %v536 = vld [vmem:[%s401 + $0x30] sm:$0xf]
        %v537 = vld [vmem:[%s401 + $0x34] sm:$0xf]
        %v538 = vld [vmem:[%s401 + $0x38] sm:$0xf]
        %v539 = vld [vmem:[%s401 + $0x3c] sm:$0xf]
        %v540 = vld [vmem:[%s401 + $0x40] sm:$0xf]
        %v541 = vld [vmem:[%s401 + $0x44] sm:$0xf]
        %v542 = vld [vmem:[%s401 + $0x48] sm:$0xf]
        %v543 = vld [vmem:[%s401 + $0x4c] sm:$0xf]
        %v544 = vld [vmem:[%s401 + $0x50] sm:$0xf]
        %v545 = vld [vmem:[%s401 + $0x54] sm:$0xf]
        %v546 = vld [vmem:[%s401 + $0x58] sm:$0xf]
        %v547 = vld [vmem:[%s401 + $0x5c] sm:$0xf]
        %v548 = vld [vmem:[%s401 + $0x60] sm:$0xf]
        %v549 = vld [vmem:[%s401 + $0x64] sm:$0xf]
        %v550 = vld [vmem:[%s401 + $0x68] sm:$0xf]
        %v551 = vld [vmem:[%s401 + $0x6c] sm:$0xf]
        %v552 = vld [vmem:[%s401 + $0x70] sm:$0xf]
        %v553 = vld [vmem:[%s401 + $0x74] sm:$0xf]
        %v554 = vld [vmem:[%s401 + $0x78] sm:$0xf]
        %v555 = vld [vmem:[%s401 + $0x7c] sm:$0xf]
        %v556 = vunpack.c.l.bf16 %v524
        %v557 = vunpack.c.l.bf16 %v525
        %v558 = vunpack.c.l.bf16 %v526
        %v559 = vunpack.c.l.bf16 %v527
        %v560 = vunpack.c.l.bf16 %v528
        %v561 = vunpack.c.l.bf16 %v529
        %v562 = vunpack.c.l.bf16 %v530
        %v563 = vunpack.c.l.bf16 %v531
        %v564 = vunpack.c.l.bf16 %v532
        %v565 = vunpack.c.l.bf16 %v533
        %v566 = vunpack.c.l.bf16 %v534
        %v567 = vunpack.c.l.bf16 %v535
        %v568 = vunpack.c.l.bf16 %v536
        %v569 = vunpack.c.l.bf16 %v537
        %v570 = vunpack.c.l.bf16 %v538
        %v571 = vunpack.c.l.bf16 %v539
        %v572 = vunpack.c.l.bf16 %v540
        %v573 = vunpack.c.l.bf16 %v541
        %v574 = vunpack.c.l.bf16 %v542
        %v575 = vunpack.c.l.bf16 %v543
        %v576 = vunpack.c.l.bf16 %v544
        %v577 = vunpack.c.l.bf16 %v545
        %v578 = vunpack.c.l.bf16 %v546
        %v579 = vunpack.c.l.bf16 %v547
        %v580 = vunpack.c.l.bf16 %v548
        %v581 = vunpack.c.l.bf16 %v549
        %v582 = vunpack.c.l.bf16 %v550
        %v583 = vunpack.c.l.bf16 %v551
        %v584 = vunpack.c.l.bf16 %v552
        %v585 = vunpack.c.l.bf16 %v553
        %v586 = vunpack.c.l.bf16 %v554
        %v587 = vunpack.c.l.bf16 %v555
        %v588 = vld [vmem:[%s411] sm:$0xf]
        %v589 = vld [vmem:[%s411 + $0x4] sm:$0xf]
        %v590 = vld [vmem:[%s411 + $0x8] sm:$0xf]
        %v591 = vld [vmem:[%s411 + $0xc] sm:$0xf]
        %v592 = vld [vmem:[%s411 + $0x10] sm:$0xf]
        %v593 = vld [vmem:[%s411 + $0x14] sm:$0xf]
        %v594 = vld [vmem:[%s411 + $0x18] sm:$0xf]
        %v595 = vld [vmem:[%s411 + $0x1c] sm:$0xf]
        %v596 = vld [vmem:[%s411 + $0x20] sm:$0xf]
        %v597 = vld [vmem:[%s411 + $0x24] sm:$0xf]
        %v598 = vld [vmem:[%s411 + $0x28] sm:$0xf]
        %v599 = vld [vmem:[%s411 + $0x2c] sm:$0xf]
        %v600 = vld [vmem:[%s411 + $0x30] sm:$0xf]
        %v601 = vld [vmem:[%s411 + $0x34] sm:$0xf]
        %v602 = vld [vmem:[%s411 + $0x38] sm:$0xf]
        %v603 = vld [vmem:[%s411 + $0x3c] sm:$0xf]
        %v604 = vld [vmem:[%s411 + $0x40] sm:$0xf]
        %v605 = vld [vmem:[%s411 + $0x44] sm:$0xf]
        %v606 = vld [vmem:[%s411 + $0x48] sm:$0xf]
        %v607 = vld [vmem:[%s411 + $0x4c] sm:$0xf]
        %v608 = vld [vmem:[%s411 + $0x50] sm:$0xf]
        %v609 = vld [vmem:[%s411 + $0x54] sm:$0xf]
        %v610 = vld [vmem:[%s411 + $0x58] sm:$0xf]
        %v611 = vld [vmem:[%s411 + $0x5c] sm:$0xf]
        %v612 = vld [vmem:[%s411 + $0x60] sm:$0xf]
        %v613 = vld [vmem:[%s411 + $0x64] sm:$0xf]
        %v614 = vld [vmem:[%s411 + $0x68] sm:$0xf]
        %v615 = vld [vmem:[%s411 + $0x6c] sm:$0xf]
        %v616 = vld [vmem:[%s411 + $0x70] sm:$0xf]
        %v617 = vld [vmem:[%s411 + $0x74] sm:$0xf]
        %v618 = vld [vmem:[%s411 + $0x78] sm:$0xf]
        %v619 = vld [vmem:[%s411 + $0x7c] sm:$0xf]
        %v620 = vunpack.c.l.bf16 %v588
        %v621 = vunpack.c.l.bf16 %v589
        %v622 = vunpack.c.l.bf16 %v590
        %v623 = vunpack.c.l.bf16 %v591
        %v624 = vunpack.c.l.bf16 %v592
        %v625 = vunpack.c.l.bf16 %v593
        %v626 = vunpack.c.l.bf16 %v594
        %v627 = vunpack.c.l.bf16 %v595
        %v628 = vunpack.c.l.bf16 %v596
        %v629 = vunpack.c.l.bf16 %v597
        %v630 = vunpack.c.l.bf16 %v598
        %v631 = vunpack.c.l.bf16 %v599
        %v632 = vunpack.c.l.bf16 %v600
        %v633 = vunpack.c.l.bf16 %v601
        %v634 = vunpack.c.l.bf16 %v602
        %v635 = vunpack.c.l.bf16 %v603
        %v636 = vunpack.c.l.bf16 %v604
        %v637 = vunpack.c.l.bf16 %v605
        %v638 = vunpack.c.l.bf16 %v606
        %v639 = vunpack.c.l.bf16 %v607
        %v640 = vunpack.c.l.bf16 %v608
        %v641 = vunpack.c.l.bf16 %v609
        %v642 = vunpack.c.l.bf16 %v610
        %v643 = vunpack.c.l.bf16 %v611
        %v644 = vunpack.c.l.bf16 %v612
        %v645 = vunpack.c.l.bf16 %v613
        %v646 = vunpack.c.l.bf16 %v614
        %v647 = vunpack.c.l.bf16 %v615
        %v648 = vunpack.c.l.bf16 %v616
        %v649 = vunpack.c.l.bf16 %v617
        %v650 = vunpack.c.l.bf16 %v618
        %v651 = vunpack.c.l.bf16 %v619
        %v652 = vadd.f32 %v556, %v620
        %v653 = vadd.f32 %v557, %v621
        %v654 = vadd.f32 %v558, %v622
        %v655 = vadd.f32 %v559, %v623
        %v656 = vadd.f32 %v560, %v624
        %v657 = vadd.f32 %v561, %v625
        %v658 = vadd.f32 %v562, %v626
        %v659 = vadd.f32 %v563, %v627
        %v660 = vadd.f32 %v564, %v628
        %v661 = vadd.f32 %v565, %v629
        %v662 = vadd.f32 %v566, %v630
        %v663 = vadd.f32 %v567, %v631
        %v664 = vadd.f32 %v568, %v632
        %v665 = vadd.f32 %v569, %v633
        %v666 = vadd.f32 %v570, %v634
        %v667 = vadd.f32 %v571, %v635
        %v668 = vadd.f32 %v572, %v636
        %v669 = vadd.f32 %v573, %v637
        %v670 = vadd.f32 %v574, %v638
        %v671 = vadd.f32 %v575, %v639
        %v672 = vadd.f32 %v576, %v640
        %v673 = vadd.f32 %v577, %v641
        %v674 = vadd.f32 %v578, %v642
        %v675 = vadd.f32 %v579, %v643
        %v676 = vadd.f32 %v580, %v644
        %v677 = vadd.f32 %v581, %v645
        %v678 = vadd.f32 %v582, %v646
        %v679 = vadd.f32 %v583, %v647
        %v680 = vadd.f32 %v584, %v648
        %v681 = vadd.f32 %v585, %v649
        %v682 = vadd.f32 %v586, %v650
        %v683 = vadd.f32 %v587, %v651
        %v684 = vld [vmem:[%s421] sm:$0xf]
        %v685 = vld [vmem:[%s421 + $0x4] sm:$0xf]
        %v686 = vld [vmem:[%s421 + $0x8] sm:$0xf]
        %v687 = vld [vmem:[%s421 + $0xc] sm:$0xf]
        %v688 = vld [vmem:[%s421 + $0x10] sm:$0xf]
        %v689 = vld [vmem:[%s421 + $0x14] sm:$0xf]
        %v690 = vld [vmem:[%s421 + $0x18] sm:$0xf]
        %v691 = vld [vmem:[%s421 + $0x1c] sm:$0xf]
        %v692 = vld [vmem:[%s421 + $0x20] sm:$0xf]
        %v693 = vld [vmem:[%s421 + $0x24] sm:$0xf]
        %v694 = vld [vmem:[%s421 + $0x28] sm:$0xf]
        %v695 = vld [vmem:[%s421 + $0x2c] sm:$0xf]
        %v696 = vld [vmem:[%s421 + $0x30] sm:$0xf]
        %v697 = vld [vmem:[%s421 + $0x34] sm:$0xf]
        %v698 = vld [vmem:[%s421 + $0x38] sm:$0xf]
        %v699 = vld [vmem:[%s421 + $0x3c] sm:$0xf]
        %v700 = vld [vmem:[%s421 + $0x40] sm:$0xf]
        %v701 = vld [vmem:[%s421 + $0x44] sm:$0xf]
        %v702 = vld [vmem:[%s421 + $0x48] sm:$0xf]
        %v703 = vld [vmem:[%s421 + $0x4c] sm:$0xf]
        %v704 = vld [vmem:[%s421 + $0x50] sm:$0xf]
        %v705 = vld [vmem:[%s421 + $0x54] sm:$0xf]
        %v706 = vld [vmem:[%s421 + $0x58] sm:$0xf]
        %v707 = vld [vmem:[%s421 + $0x5c] sm:$0xf]
        %v708 = vld [vmem:[%s421 + $0x60] sm:$0xf]
        %v709 = vld [vmem:[%s421 + $0x64] sm:$0xf]
        %v710 = vld [vmem:[%s421 + $0x68] sm:$0xf]
        %v711 = vld [vmem:[%s421 + $0x6c] sm:$0xf]
        %v712 = vld [vmem:[%s421 + $0x70] sm:$0xf]
        %v713 = vld [vmem:[%s421 + $0x74] sm:$0xf]
        %v714 = vld [vmem:[%s421 + $0x78] sm:$0xf]
        %v715 = vld [vmem:[%s421 + $0x7c] sm:$0xf]
        %v716 = vunpack.c.l.bf16 %v684
        %v717 = vunpack.c.l.bf16 %v685
        %v718 = vunpack.c.l.bf16 %v686
        %v719 = vunpack.c.l.bf16 %v687
        %v720 = vunpack.c.l.bf16 %v688
        %v721 = vunpack.c.l.bf16 %v689
        %v722 = vunpack.c.l.bf16 %v690
        %v723 = vunpack.c.l.bf16 %v691
        %v724 = vunpack.c.l.bf16 %v692
        %v725 = vunpack.c.l.bf16 %v693
        %v726 = vunpack.c.l.bf16 %v694
        %v727 = vunpack.c.l.bf16 %v695
        %v728 = vunpack.c.l.bf16 %v696
        %v729 = vunpack.c.l.bf16 %v697
        %v730 = vunpack.c.l.bf16 %v698
        %v731 = vunpack.c.l.bf16 %v699
        %v732 = vunpack.c.l.bf16 %v700
        %v733 = vunpack.c.l.bf16 %v701
        %v734 = vunpack.c.l.bf16 %v702
        %v735 = vunpack.c.l.bf16 %v703
        %v736 = vunpack.c.l.bf16 %v704
        %v737 = vunpack.c.l.bf16 %v705
        %v738 = vunpack.c.l.bf16 %v706
        %v739 = vunpack.c.l.bf16 %v707
        %v740 = vunpack.c.l.bf16 %v708
        %v741 = vunpack.c.l.bf16 %v709
        %v742 = vunpack.c.l.bf16 %v710
        %v743 = vunpack.c.l.bf16 %v711
        %v744 = vunpack.c.l.bf16 %v712
        %v745 = vunpack.c.l.bf16 %v713
        %v746 = vunpack.c.l.bf16 %v714
        %v747 = vunpack.c.l.bf16 %v715
        %v748 = vsub.f32 %v652, %v716
        %v749 = vsub.f32 %v653, %v717
        %v750 = vsub.f32 %v654, %v718
        %v751 = vsub.f32 %v655, %v719
        %v752 = vsub.f32 %v656, %v720
        %v753 = vsub.f32 %v657, %v721
        %v754 = vsub.f32 %v658, %v722
        %v755 = vsub.f32 %v659, %v723
        %v756 = vsub.f32 %v660, %v724
        %v757 = vsub.f32 %v661, %v725
        %v758 = vsub.f32 %v662, %v726
        %v759 = vsub.f32 %v663, %v727
        %v760 = vsub.f32 %v664, %v728
        %v761 = vsub.f32 %v665, %v729
        %v762 = vsub.f32 %v666, %v730
        %v763 = vsub.f32 %v667, %v731
        %v764 = vsub.f32 %v668, %v732
        %v765 = vsub.f32 %v669, %v733
        %v766 = vsub.f32 %v670, %v734
        %v767 = vsub.f32 %v671, %v735
        %v768 = vsub.f32 %v672, %v736
        %v769 = vsub.f32 %v673, %v737
        %v770 = vsub.f32 %v674, %v738
        %v771 = vsub.f32 %v675, %v739
        %v772 = vsub.f32 %v676, %v740
        %v773 = vsub.f32 %v677, %v741
        %v774 = vsub.f32 %v678, %v742
        %v775 = vsub.f32 %v679, %v743
        %v776 = vsub.f32 %v680, %v744
        %v777 = vsub.f32 %v681, %v745
        %v778 = vsub.f32 %v682, %v746
        %v779 = vsub.f32 %v683, %v747
        %v780 = vld [vmem:[%s431] sm:$0xf]
        %v781 = vld [vmem:[%s431 + $0x4] sm:$0xf]
        %v782 = vld [vmem:[%s431 + $0x8] sm:$0xf]
        %v783 = vld [vmem:[%s431 + $0xc] sm:$0xf]
        %v784 = vld [vmem:[%s431 + $0x10] sm:$0xf]
        %v785 = vld [vmem:[%s431 + $0x14] sm:$0xf]
        %v786 = vld [vmem:[%s431 + $0x18] sm:$0xf]
        %v787 = vld [vmem:[%s431 + $0x1c] sm:$0xf]
        %v788 = vld [vmem:[%s431 + $0x20] sm:$0xf]
        %v789 = vld [vmem:[%s431 + $0x24] sm:$0xf]
        %v790 = vld [vmem:[%s431 + $0x28] sm:$0xf]
        %v791 = vld [vmem:[%s431 + $0x2c] sm:$0xf]
        %v792 = vld [vmem:[%s431 + $0x30] sm:$0xf]
        %v793 = vld [vmem:[%s431 + $0x34] sm:$0xf]
        %v794 = vld [vmem:[%s431 + $0x38] sm:$0xf]
        %v795 = vld [vmem:[%s431 + $0x3c] sm:$0xf]
        %v796 = vld [vmem:[%s431 + $0x40] sm:$0xf]
        %v797 = vld [vmem:[%s431 + $0x44] sm:$0xf]
        %v798 = vld [vmem:[%s431 + $0x48] sm:$0xf]
        %v799 = vld [vmem:[%s431 + $0x4c] sm:$0xf]
        %v800 = vld [vmem:[%s431 + $0x50] sm:$0xf]
        %v801 = vld [vmem:[%s431 + $0x54] sm:$0xf]
        %v802 = vld [vmem:[%s431 + $0x58] sm:$0xf]
        %v803 = vld [vmem:[%s431 + $0x5c] sm:$0xf]
        %v804 = vld [vmem:[%s431 + $0x60] sm:$0xf]
        %v805 = vld [vmem:[%s431 + $0x64] sm:$0xf]
        %v806 = vld [vmem:[%s431 + $0x68] sm:$0xf]
        %v807 = vld [vmem:[%s431 + $0x6c] sm:$0xf]
        %v808 = vld [vmem:[%s431 + $0x70] sm:$0xf]
        %v809 = vld [vmem:[%s431 + $0x74] sm:$0xf]
        %v810 = vld [vmem:[%s431 + $0x78] sm:$0xf]
        %v811 = vld [vmem:[%s431 + $0x7c] sm:$0xf]
        %v812 = vunpack.c.l.bf16 %v780
        %v813 = vunpack.c.l.bf16 %v781
        %v814 = vunpack.c.l.bf16 %v782
        %v815 = vunpack.c.l.bf16 %v783
        %v816 = vunpack.c.l.bf16 %v784
        %v817 = vunpack.c.l.bf16 %v785
        %v818 = vunpack.c.l.bf16 %v786
        %v819 = vunpack.c.l.bf16 %v787
        %v820 = vunpack.c.l.bf16 %v788
        %v821 = vunpack.c.l.bf16 %v789
        %v822 = vunpack.c.l.bf16 %v790
        %v823 = vunpack.c.l.bf16 %v791
        %v824 = vunpack.c.l.bf16 %v792
        %v825 = vunpack.c.l.bf16 %v793
        %v826 = vunpack.c.l.bf16 %v794
        %v827 = vunpack.c.l.bf16 %v795
        %v828 = vunpack.c.l.bf16 %v796
        %v829 = vunpack.c.l.bf16 %v797
        %v830 = vunpack.c.l.bf16 %v798
        %v831 = vunpack.c.l.bf16 %v799
        %v832 = vunpack.c.l.bf16 %v800
        %v833 = vunpack.c.l.bf16 %v801
        %v834 = vunpack.c.l.bf16 %v802
        %v835 = vunpack.c.l.bf16 %v803
        %v836 = vunpack.c.l.bf16 %v804
        %v837 = vunpack.c.l.bf16 %v805
        %v838 = vunpack.c.l.bf16 %v806
        %v839 = vunpack.c.l.bf16 %v807
        %v840 = vunpack.c.l.bf16 %v808
        %v841 = vunpack.c.l.bf16 %v809
        %v842 = vunpack.c.l.bf16 %v810
        %v843 = vunpack.c.l.bf16 %v811
        %v844 = vld [vmem:[%s441] sm:$0xf]
        %v845 = vld [vmem:[%s441 + $0x4] sm:$0xf]
        %v846 = vld [vmem:[%s441 + $0x8] sm:$0xf]
        %v847 = vld [vmem:[%s441 + $0xc] sm:$0xf]
        %v848 = vld [vmem:[%s441 + $0x10] sm:$0xf]
        %v849 = vld [vmem:[%s441 + $0x14] sm:$0xf]
        %v850 = vld [vmem:[%s441 + $0x18] sm:$0xf]
        %v851 = vld [vmem:[%s441 + $0x1c] sm:$0xf]
        %v852 = vld [vmem:[%s441 + $0x20] sm:$0xf]
        %v853 = vld [vmem:[%s441 + $0x24] sm:$0xf]
        %v854 = vld [vmem:[%s441 + $0x28] sm:$0xf]
        %v855 = vld [vmem:[%s441 + $0x2c] sm:$0xf]
        %v856 = vld [vmem:[%s441 + $0x30] sm:$0xf]
        %v857 = vld [vmem:[%s441 + $0x34] sm:$0xf]
        %v858 = vld [vmem:[%s441 + $0x38] sm:$0xf]
        %v859 = vld [vmem:[%s441 + $0x3c] sm:$0xf]
        %v860 = vld [vmem:[%s441 + $0x40] sm:$0xf]
        %v861 = vld [vmem:[%s441 + $0x44] sm:$0xf]
        %v862 = vld [vmem:[%s441 + $0x48] sm:$0xf]
        %v863 = vld [vmem:[%s441 + $0x4c] sm:$0xf]
        %v864 = vld [vmem:[%s441 + $0x50] sm:$0xf]
        %v865 = vld [vmem:[%s441 + $0x54] sm:$0xf]
        %v866 = vld [vmem:[%s441 + $0x58] sm:$0xf]
        %v867 = vld [vmem:[%s441 + $0x5c] sm:$0xf]
        %v868 = vld [vmem:[%s441 + $0x60] sm:$0xf]
        %v869 = vld [vmem:[%s441 + $0x64] sm:$0xf]
        %v870 = vld [vmem:[%s441 + $0x68] sm:$0xf]
        %v871 = vld [vmem:[%s441 + $0x6c] sm:$0xf]
        %v872 = vld [vmem:[%s441 + $0x70] sm:$0xf]
        %v873 = vld [vmem:[%s441 + $0x74] sm:$0xf]
        %v874 = vld [vmem:[%s441 + $0x78] sm:$0xf]
        %v875 = vld [vmem:[%s441 + $0x7c] sm:$0xf]
        %v876 = vunpack.c.l.bf16 %v844
        %v877 = vunpack.c.l.bf16 %v845
        %v878 = vunpack.c.l.bf16 %v846
        %v879 = vunpack.c.l.bf16 %v847
        %v880 = vunpack.c.l.bf16 %v848
        %v881 = vunpack.c.l.bf16 %v849
        %v882 = vunpack.c.l.bf16 %v850
        %v883 = vunpack.c.l.bf16 %v851
        %v884 = vunpack.c.l.bf16 %v852
        %v885 = vunpack.c.l.bf16 %v853
        %v886 = vunpack.c.l.bf16 %v854
        %v887 = vunpack.c.l.bf16 %v855
        %v888 = vunpack.c.l.bf16 %v856
        %v889 = vunpack.c.l.bf16 %v857
        %v890 = vunpack.c.l.bf16 %v858
        %v891 = vunpack.c.l.bf16 %v859
        %v892 = vunpack.c.l.bf16 %v860
        %v893 = vunpack.c.l.bf16 %v861
        %v894 = vunpack.c.l.bf16 %v862
        %v895 = vunpack.c.l.bf16 %v863
        %v896 = vunpack.c.l.bf16 %v864
        %v897 = vunpack.c.l.bf16 %v865
        %v898 = vunpack.c.l.bf16 %v866
        %v899 = vunpack.c.l.bf16 %v867
        %v900 = vunpack.c.l.bf16 %v868
        %v901 = vunpack.c.l.bf16 %v869
        %v902 = vunpack.c.l.bf16 %v870
        %v903 = vunpack.c.l.bf16 %v871
        %v904 = vunpack.c.l.bf16 %v872
        %v905 = vunpack.c.l.bf16 %v873
        %v906 = vunpack.c.l.bf16 %v874
        %v907 = vunpack.c.l.bf16 %v875
        %v908 = vadd.f32 %v812, %v876
        %v909 = vadd.f32 %v813, %v877
        %v910 = vadd.f32 %v814, %v878
        %v911 = vadd.f32 %v815, %v879
        %v912 = vadd.f32 %v816, %v880
        %v913 = vadd.f32 %v817, %v881
        %v914 = vadd.f32 %v818, %v882
        %v915 = vadd.f32 %v819, %v883
        %v916 = vadd.f32 %v820, %v884
        %v917 = vadd.f32 %v821, %v885
        %v918 = vadd.f32 %v822, %v886
        %v919 = vadd.f32 %v823, %v887
        %v920 = vadd.f32 %v824, %v888
        %v921 = vadd.f32 %v825, %v889
        %v922 = vadd.f32 %v826, %v890
        %v923 = vadd.f32 %v827, %v891
        %v924 = vadd.f32 %v828, %v892
        %v925 = vadd.f32 %v829, %v893
        %v926 = vadd.f32 %v830, %v894
        %v927 = vadd.f32 %v831, %v895
        %v928 = vadd.f32 %v832, %v896
        %v929 = vadd.f32 %v833, %v897
        %v930 = vadd.f32 %v834, %v898
        %v931 = vadd.f32 %v835, %v899
        %v932 = vadd.f32 %v836, %v900
        %v933 = vadd.f32 %v837, %v901
        %v934 = vadd.f32 %v838, %v902
        %v935 = vadd.f32 %v839, %v903
        %v936 = vadd.f32 %v840, %v904
        %v937 = vadd.f32 %v841, %v905
        %v938 = vadd.f32 %v842, %v906
        %v939 = vadd.f32 %v843, %v907
        %v940 = vld [vmem:[%s451] sm:$0xf]
        %v941 = vld [vmem:[%s451 + $0x4] sm:$0xf]
        %v942 = vld [vmem:[%s451 + $0x8] sm:$0xf]
        %v943 = vld [vmem:[%s451 + $0xc] sm:$0xf]
        %v944 = vld [vmem:[%s451 + $0x10] sm:$0xf]
        %v945 = vld [vmem:[%s451 + $0x14] sm:$0xf]
        %v946 = vld [vmem:[%s451 + $0x18] sm:$0xf]
        %v947 = vld [vmem:[%s451 + $0x1c] sm:$0xf]
        %v948 = vld [vmem:[%s451 + $0x20] sm:$0xf]
        %v949 = vld [vmem:[%s451 + $0x24] sm:$0xf]
        %v950 = vld [vmem:[%s451 + $0x28] sm:$0xf]
        %v951 = vld [vmem:[%s451 + $0x2c] sm:$0xf]
        %v952 = vld [vmem:[%s451 + $0x30] sm:$0xf]
        %v953 = vld [vmem:[%s451 + $0x34] sm:$0xf]
        %v954 = vld [vmem:[%s451 + $0x38] sm:$0xf]
        %v955 = vld [vmem:[%s451 + $0x3c] sm:$0xf]
        %v956 = vld [vmem:[%s451 + $0x40] sm:$0xf]
        %v957 = vld [vmem:[%s451 + $0x44] sm:$0xf]
        %v958 = vld [vmem:[%s451 + $0x48] sm:$0xf]
        %v959 = vld [vmem:[%s451 + $0x4c] sm:$0xf]
        %v960 = vld [vmem:[%s451 + $0x50] sm:$0xf]
        %v961 = vld [vmem:[%s451 + $0x54] sm:$0xf]
        %v962 = vld [vmem:[%s451 + $0x58] sm:$0xf]
        %v963 = vld [vmem:[%s451 + $0x5c] sm:$0xf]
        %v964 = vld [vmem:[%s451 + $0x60] sm:$0xf]
        %v965 = vld [vmem:[%s451 + $0x64] sm:$0xf]
        %v966 = vld [vmem:[%s451 + $0x68] sm:$0xf]
        %v967 = vld [vmem:[%s451 + $0x6c] sm:$0xf]
        %v968 = vld [vmem:[%s451 + $0x70] sm:$0xf]
        %v969 = vld [vmem:[%s451 + $0x74] sm:$0xf]
        %v970 = vld [vmem:[%s451 + $0x78] sm:$0xf]
        %v971 = vld [vmem:[%s451 + $0x7c] sm:$0xf]
        %v972 = vunpack.c.l.bf16 %v940
        %v973 = vunpack.c.l.bf16 %v941
        %v974 = vunpack.c.l.bf16 %v942
        %v975 = vunpack.c.l.bf16 %v943
        %v976 = vunpack.c.l.bf16 %v944
        %v977 = vunpack.c.l.bf16 %v945
        %v978 = vunpack.c.l.bf16 %v946
        %v979 = vunpack.c.l.bf16 %v947
        %v980 = vunpack.c.l.bf16 %v948
        %v981 = vunpack.c.l.bf16 %v949
        %v982 = vunpack.c.l.bf16 %v950
        %v983 = vunpack.c.l.bf16 %v951
        %v984 = vunpack.c.l.bf16 %v952
        %v985 = vunpack.c.l.bf16 %v953
        %v986 = vunpack.c.l.bf16 %v954
        %v987 = vunpack.c.l.bf16 %v955
        %v988 = vunpack.c.l.bf16 %v956
        %v989 = vunpack.c.l.bf16 %v957
        %v990 = vunpack.c.l.bf16 %v958
        %v991 = vunpack.c.l.bf16 %v959
        %v992 = vunpack.c.l.bf16 %v960
        %v993 = vunpack.c.l.bf16 %v961
        %v994 = vunpack.c.l.bf16 %v962
        %v995 = vunpack.c.l.bf16 %v963
        %v996 = vunpack.c.l.bf16 %v964
        %v997 = vunpack.c.l.bf16 %v965
        %v998 = vunpack.c.l.bf16 %v966
        %v999 = vunpack.c.l.bf16 %v967
        %v1000 = vunpack.c.l.bf16 %v968
        %v1001 = vunpack.c.l.bf16 %v969
        %v1002 = vunpack.c.l.bf16 %v970
        %v1003 = vunpack.c.l.bf16 %v971
        %v1004 = vsub.f32 %v908, %v972
        %v1005 = vsub.f32 %v909, %v973
        %v1006 = vsub.f32 %v910, %v974
        %v1007 = vsub.f32 %v911, %v975
        %v1008 = vsub.f32 %v912, %v976
        %v1009 = vsub.f32 %v913, %v977
        %v1010 = vsub.f32 %v914, %v978
        %v1011 = vsub.f32 %v915, %v979
        %v1012 = vsub.f32 %v916, %v980
        %v1013 = vsub.f32 %v917, %v981
        %v1014 = vsub.f32 %v918, %v982
        %v1015 = vsub.f32 %v919, %v983
        %v1016 = vsub.f32 %v920, %v984
        %v1017 = vsub.f32 %v921, %v985
        %v1018 = vsub.f32 %v922, %v986
        %v1019 = vsub.f32 %v923, %v987
        %v1020 = vsub.f32 %v924, %v988
        %v1021 = vsub.f32 %v925, %v989
        %v1022 = vsub.f32 %v926, %v990
        %v1023 = vsub.f32 %v927, %v991
        %v1024 = vsub.f32 %v928, %v992
        %v1025 = vsub.f32 %v929, %v993
        %v1026 = vsub.f32 %v930, %v994
        %v1027 = vsub.f32 %v931, %v995
        %v1028 = vsub.f32 %v932, %v996
        %v1029 = vsub.f32 %v933, %v997
        %v1030 = vsub.f32 %v934, %v998
        %v1031 = vsub.f32 %v935, %v999
        %v1032 = vsub.f32 %v936, %v1000
        %v1033 = vsub.f32 %v937, %v1001
        %v1034 = vsub.f32 %v938, %v1002
        %v1035 = vsub.f32 %v939, %v1003
        %v1036 = vmul.f32 %v748, %v748
        %v1037 = vmul.f32 %v749, %v749
        %v1038 = vmul.f32 %v750, %v750
        %v1039 = vmul.f32 %v751, %v751
        %v1040 = vmul.f32 %v752, %v752
        %v1041 = vmul.f32 %v753, %v753
        %v1042 = vmul.f32 %v754, %v754
        %v1043 = vmul.f32 %v755, %v755
        %v1044 = vmul.f32 %v756, %v756
        %v1045 = vmul.f32 %v757, %v757
        %v1046 = vmul.f32 %v758, %v758
        %v1047 = vmul.f32 %v759, %v759
        %v1048 = vmul.f32 %v760, %v760
        %v1049 = vmul.f32 %v761, %v761
        %v1050 = vmul.f32 %v762, %v762
        %v1051 = vmul.f32 %v763, %v763
        %v1052 = vmul.f32 %v764, %v764
        %v1053 = vmul.f32 %v765, %v765
        %v1054 = vmul.f32 %v766, %v766
        %v1055 = vmul.f32 %v767, %v767
        %v1056 = vmul.f32 %v768, %v768
        %v1057 = vmul.f32 %v769, %v769
        %v1058 = vmul.f32 %v770, %v770
        %v1059 = vmul.f32 %v771, %v771
        %v1060 = vmul.f32 %v772, %v772
        %v1061 = vmul.f32 %v773, %v773
        %v1062 = vmul.f32 %v774, %v774
        %v1063 = vmul.f32 %v775, %v775
        %v1064 = vmul.f32 %v776, %v776
        %v1065 = vmul.f32 %v777, %v777
        %v1066 = vmul.f32 %v778, %v778
        %v1067 = vmul.f32 %v779, %v779
        %1068 = vadd.xlane.f32.xlu0 %v1036
        %v1069 = vpop.xlane.xlu0 %1068
        %1070 = vadd.xlane.f32.xlu0 %v1037
        %v1071 = vpop.xlane.xlu0 %1070
        %1072 = vadd.xlane.f32.xlu0 %v1038
        %v1073 = vpop.xlane.xlu0 %1072
        %1074 = vadd.xlane.f32.xlu0 %v1039
        %v1075 = vpop.xlane.xlu0 %1074
        %1076 = vadd.xlane.f32.xlu0 %v1040
        %v1077 = vpop.xlane.xlu0 %1076
        %1078 = vadd.xlane.f32.xlu0 %v1041
        %v1079 = vpop.xlane.xlu0 %1078
        %1080 = vadd.xlane.f32.xlu0 %v1042
        %v1081 = vpop.xlane.xlu0 %1080
        %1082 = vadd.xlane.f32.xlu0 %v1043
        %v1083 = vpop.xlane.xlu0 %1082
        %1084 = vadd.xlane.f32.xlu0 %v1044
        %v1085 = vpop.xlane.xlu0 %1084
        %1086 = vadd.xlane.f32.xlu0 %v1045
        %v1087 = vpop.xlane.xlu0 %1086
        %1088 = vadd.xlane.f32.xlu0 %v1046
        %v1089 = vpop.xlane.xlu0 %1088
        %1090 = vadd.xlane.f32.xlu0 %v1047
        %v1091 = vpop.xlane.xlu0 %1090
        %1092 = vadd.xlane.f32.xlu0 %v1048
        %v1093 = vpop.xlane.xlu0 %1092
        %1094 = vadd.xlane.f32.xlu0 %v1049
        %v1095 = vpop.xlane.xlu0 %1094
        %1096 = vadd.xlane.f32.xlu0 %v1050
        %v1097 = vpop.xlane.xlu0 %1096
        %1098 = vadd.xlane.f32.xlu0 %v1051
        %v1099 = vpop.xlane.xlu0 %1098
        %1100 = vadd.xlane.f32.xlu0 %v1052
        %v1101 = vpop.xlane.xlu0 %1100
        %1102 = vadd.xlane.f32.xlu0 %v1053
        %v1103 = vpop.xlane.xlu0 %1102
        %1104 = vadd.xlane.f32.xlu0 %v1054
        %v1105 = vpop.xlane.xlu0 %1104
        %1106 = vadd.xlane.f32.xlu0 %v1055
        %v1107 = vpop.xlane.xlu0 %1106
        %1108 = vadd.xlane.f32.xlu0 %v1056
        %v1109 = vpop.xlane.xlu0 %1108
        %1110 = vadd.xlane.f32.xlu0 %v1057
        %v1111 = vpop.xlane.xlu0 %1110
        %1112 = vadd.xlane.f32.xlu0 %v1058
        %v1113 = vpop.xlane.xlu0 %1112
        %1114 = vadd.xlane.f32.xlu0 %v1059
        %v1115 = vpop.xlane.xlu0 %1114
        %1116 = vadd.xlane.f32.xlu0 %v1060
        %v1117 = vpop.xlane.xlu0 %1116
        %1118 = vadd.xlane.f32.xlu0 %v1061
        %v1119 = vpop.xlane.xlu0 %1118
        %1120 = vadd.xlane.f32.xlu0 %v1062
        %v1121 = vpop.xlane.xlu0 %1120
        %1122 = vadd.xlane.f32.xlu0 %v1063
        %v1123 = vpop.xlane.xlu0 %1122
        %1124 = vadd.xlane.f32.xlu0 %v1064
        %v1125 = vpop.xlane.xlu0 %1124
        %1126 = vadd.xlane.f32.xlu0 %v1065
        %v1127 = vpop.xlane.xlu0 %1126
        %1128 = vadd.xlane.f32.xlu0 %v1066
        %v1129 = vpop.xlane.xlu0 %1128
        %1130 = vadd.xlane.f32.xlu0 %v1067
        %v1131 = vpop.xlane.xlu0 %1130
        %v1132 = vrsqrt.pop %v1069
        %v1133 = vmul.f32 %v1132, %v1069
        %v1134 = vmul.f32 %v1133, %v1132
        %v1135 = vmul.f32 0.5, %v1134
        %v1136 = vsub.f32 1.5, %v1135
        %v1137 = vmul.f32 %v1132, %v1136
        %v1138 = vmul.f32 %v1069, %v1137
        %vm1139 = vcmp.eq.f32.partialorder %v1069, inf
        %v1140 = vsel %vm1139, %v1069, %v1138
        %vm1141 = vcmp.eq.f32.partialorder %v1069, 0.0
        %v1142 = vand.u32 %v1069, 2147483648
        %v1143 = vsel %vm1141, %v1142, %v1140
        %v1144 = vrsqrt.pop %v1071
        %v1145 = vmul.f32 %v1144, %v1071
        %v1146 = vmul.f32 %v1145, %v1144
        %v1147 = vmul.f32 0.5, %v1146
        %v1148 = vsub.f32 1.5, %v1147
        %v1149 = vmul.f32 %v1144, %v1148
        %v1150 = vmul.f32 %v1071, %v1149
        %vm1151 = vcmp.eq.f32.partialorder %v1071, inf
        %v1152 = vsel %vm1151, %v1071, %v1150
        %vm1153 = vcmp.eq.f32.partialorder %v1071, 0.0
        %v1154 = vand.u32 %v1071, 2147483648
        %v1155 = vsel %vm1153, %v1154, %v1152
        %v1156 = vrsqrt.pop %v1073
        %v1157 = vmul.f32 %v1156, %v1073
        %v1158 = vmul.f32 %v1157, %v1156
        %v1159 = vmul.f32 0.5, %v1158
        %v1160 = vsub.f32 1.5, %v1159
        %v1161 = vmul.f32 %v1156, %v1160
        %v1162 = vmul.f32 %v1073, %v1161
        %vm1163 = vcmp.eq.f32.partialorder %v1073, inf
        %v1164 = vsel %vm1163, %v1073, %v1162
        %vm1165 = vcmp.eq.f32.partialorder %v1073, 0.0
        %v1166 = vand.u32 %v1073, 2147483648
        %v1167 = vsel %vm1165, %v1166, %v1164
        %v1168 = vrsqrt.pop %v1075
        %v1169 = vmul.f32 %v1168, %v1075
        %v1170 = vmul.f32 %v1169, %v1168
        %v1171 = vmul.f32 0.5, %v1170
        %v1172 = vsub.f32 1.5, %v1171
        %v1173 = vmul.f32 %v1168, %v1172
        %v1174 = vmul.f32 %v1075, %v1173
        %vm1175 = vcmp.eq.f32.partialorder %v1075, inf
        %v1176 = vsel %vm1175, %v1075, %v1174
        %vm1177 = vcmp.eq.f32.partialorder %v1075, 0.0
        %v1178 = vand.u32 %v1075, 2147483648
        %v1179 = vsel %vm1177, %v1178, %v1176
        %v1180 = vrsqrt.pop %v1077
        %v1181 = vmul.f32 %v1180, %v1077
        %v1182 = vmul.f32 %v1181, %v1180
        %v1183 = vmul.f32 0.5, %v1182
        %v1184 = vsub.f32 1.5, %v1183
        %v1185 = vmul.f32 %v1180, %v1184
        %v1186 = vmul.f32 %v1077, %v1185
        %vm1187 = vcmp.eq.f32.partialorder %v1077, inf
        %v1188 = vsel %vm1187, %v1077, %v1186
        %vm1189 = vcmp.eq.f32.partialorder %v1077, 0.0
        %v1190 = vand.u32 %v1077, 2147483648
        %v1191 = vsel %vm1189, %v1190, %v1188
        %v1192 = vrsqrt.pop %v1079
        %v1193 = vmul.f32 %v1192, %v1079
        %v1194 = vmul.f32 %v1193, %v1192
        %v1195 = vmul.f32 0.5, %v1194
        %v1196 = vsub.f32 1.5, %v1195
        %v1197 = vmul.f32 %v1192, %v1196
        %v1198 = vmul.f32 %v1079, %v1197
        %vm1199 = vcmp.eq.f32.partialorder %v1079, inf
        %v1200 = vsel %vm1199, %v1079, %v1198
        %vm1201 = vcmp.eq.f32.partialorder %v1079, 0.0
        %v1202 = vand.u32 %v1079, 2147483648
        %v1203 = vsel %vm1201, %v1202, %v1200
        %v1204 = vrsqrt.pop %v1081
        %v1205 = vmul.f32 %v1204, %v1081
        %v1206 = vmul.f32 %v1205, %v1204
        %v1207 = vmul.f32 0.5, %v1206
        %v1208 = vsub.f32 1.5, %v1207
        %v1209 = vmul.f32 %v1204, %v1208
        %v1210 = vmul.f32 %v1081, %v1209
        %vm1211 = vcmp.eq.f32.partialorder %v1081, inf
        %v1212 = vsel %vm1211, %v1081, %v1210
        %vm1213 = vcmp.eq.f32.partialorder %v1081, 0.0
        %v1214 = vand.u32 %v1081, 2147483648
        %v1215 = vsel %vm1213, %v1214, %v1212
        %v1216 = vrsqrt.pop %v1083
        %v1217 = vmul.f32 %v1216, %v1083
        %v1218 = vmul.f32 %v1217, %v1216
        %v1219 = vmul.f32 0.5, %v1218
        %v1220 = vsub.f32 1.5, %v1219
        %v1221 = vmul.f32 %v1216, %v1220
        %v1222 = vmul.f32 %v1083, %v1221
        %vm1223 = vcmp.eq.f32.partialorder %v1083, inf
        %v1224 = vsel %vm1223, %v1083, %v1222
        %vm1225 = vcmp.eq.f32.partialorder %v1083, 0.0
        %v1226 = vand.u32 %v1083, 2147483648
        %v1227 = vsel %vm1225, %v1226, %v1224
        %v1228 = vrsqrt.pop %v1085
        %v1229 = vmul.f32 %v1228, %v1085
        %v1230 = vmul.f32 %v1229, %v1228
        %v1231 = vmul.f32 0.5, %v1230
        %v1232 = vsub.f32 1.5, %v1231
        %v1233 = vmul.f32 %v1228, %v1232
        %v1234 = vmul.f32 %v1085, %v1233
        %vm1235 = vcmp.eq.f32.partialorder %v1085, inf
        %v1236 = vsel %vm1235, %v1085, %v1234
        %vm1237 = vcmp.eq.f32.partialorder %v1085, 0.0
        %v1238 = vand.u32 %v1085, 2147483648
        %v1239 = vsel %vm1237, %v1238, %v1236
        %v1240 = vrsqrt.pop %v1087
        %v1241 = vmul.f32 %v1240, %v1087
        %v1242 = vmul.f32 %v1241, %v1240
        %v1243 = vmul.f32 0.5, %v1242
        %v1244 = vsub.f32 1.5, %v1243
        %v1245 = vmul.f32 %v1240, %v1244
        %v1246 = vmul.f32 %v1087, %v1245
        %vm1247 = vcmp.eq.f32.partialorder %v1087, inf
        %v1248 = vsel %vm1247, %v1087, %v1246
        %vm1249 = vcmp.eq.f32.partialorder %v1087, 0.0
        %v1250 = vand.u32 %v1087, 2147483648
        %v1251 = vsel %vm1249, %v1250, %v1248
        %v1252 = vrsqrt.pop %v1089
        %v1253 = vmul.f32 %v1252, %v1089
        %v1254 = vmul.f32 %v1253, %v1252
        %v1255 = vmul.f32 0.5, %v1254
        %v1256 = vsub.f32 1.5, %v1255
        %v1257 = vmul.f32 %v1252, %v1256
        %v1258 = vmul.f32 %v1089, %v1257
        %vm1259 = vcmp.eq.f32.partialorder %v1089, inf
        %v1260 = vsel %vm1259, %v1089, %v1258
        %vm1261 = vcmp.eq.f32.partialorder %v1089, 0.0
        %v1262 = vand.u32 %v1089, 2147483648
        %v1263 = vsel %vm1261, %v1262, %v1260
        %v1264 = vrsqrt.pop %v1091
        %v1265 = vmul.f32 %v1264, %v1091
        %v1266 = vmul.f32 %v1265, %v1264
        %v1267 = vmul.f32 0.5, %v1266
        %v1268 = vsub.f32 1.5, %v1267
        %v1269 = vmul.f32 %v1264, %v1268
        %v1270 = vmul.f32 %v1091, %v1269
        %vm1271 = vcmp.eq.f32.partialorder %v1091, inf
        %v1272 = vsel %vm1271, %v1091, %v1270
        %vm1273 = vcmp.eq.f32.partialorder %v1091, 0.0
        %v1274 = vand.u32 %v1091, 2147483648
        %v1275 = vsel %vm1273, %v1274, %v1272
        %v1276 = vrsqrt.pop %v1093
        %v1277 = vmul.f32 %v1276, %v1093
        %v1278 = vmul.f32 %v1277, %v1276
        %v1279 = vmul.f32 0.5, %v1278
        %v1280 = vsub.f32 1.5, %v1279
        %v1281 = vmul.f32 %v1276, %v1280
        %v1282 = vmul.f32 %v1093, %v1281
        %vm1283 = vcmp.eq.f32.partialorder %v1093, inf
        %v1284 = vsel %vm1283, %v1093, %v1282
        %vm1285 = vcmp.eq.f32.partialorder %v1093, 0.0
        %v1286 = vand.u32 %v1093, 2147483648
        %v1287 = vsel %vm1285, %v1286, %v1284
        %v1288 = vrsqrt.pop %v1095
        %v1289 = vmul.f32 %v1288, %v1095
        %v1290 = vmul.f32 %v1289, %v1288
        %v1291 = vmul.f32 0.5, %v1290
        %v1292 = vsub.f32 1.5, %v1291
        %v1293 = vmul.f32 %v1288, %v1292
        %v1294 = vmul.f32 %v1095, %v1293
        %vm1295 = vcmp.eq.f32.partialorder %v1095, inf
        %v1296 = vsel %vm1295, %v1095, %v1294
        %vm1297 = vcmp.eq.f32.partialorder %v1095, 0.0
        %v1298 = vand.u32 %v1095, 2147483648
        %v1299 = vsel %vm1297, %v1298, %v1296
        %v1300 = vrsqrt.pop %v1097
        %v1301 = vmul.f32 %v1300, %v1097
        %v1302 = vmul.f32 %v1301, %v1300
        %v1303 = vmul.f32 0.5, %v1302
        %v1304 = vsub.f32 1.5, %v1303
        %v1305 = vmul.f32 %v1300, %v1304
        %v1306 = vmul.f32 %v1097, %v1305
        %vm1307 = vcmp.eq.f32.partialorder %v1097, inf
        %v1308 = vsel %vm1307, %v1097, %v1306
        %vm1309 = vcmp.eq.f32.partialorder %v1097, 0.0
        %v1310 = vand.u32 %v1097, 2147483648
        %v1311 = vsel %vm1309, %v1310, %v1308
        %v1312 = vrsqrt.pop %v1099
        %v1313 = vmul.f32 %v1312, %v1099
        %v1314 = vmul.f32 %v1313, %v1312
        %v1315 = vmul.f32 0.5, %v1314
        %v1316 = vsub.f32 1.5, %v1315
        %v1317 = vmul.f32 %v1312, %v1316
        %v1318 = vmul.f32 %v1099, %v1317
        %vm1319 = vcmp.eq.f32.partialorder %v1099, inf
        %v1320 = vsel %vm1319, %v1099, %v1318
        %vm1321 = vcmp.eq.f32.partialorder %v1099, 0.0
        %v1322 = vand.u32 %v1099, 2147483648
        %v1323 = vsel %vm1321, %v1322, %v1320
        %v1324 = vrsqrt.pop %v1101
        %v1325 = vmul.f32 %v1324, %v1101
        %v1326 = vmul.f32 %v1325, %v1324
        %v1327 = vmul.f32 0.5, %v1326
        %v1328 = vsub.f32 1.5, %v1327
        %v1329 = vmul.f32 %v1324, %v1328
        %v1330 = vmul.f32 %v1101, %v1329
        %vm1331 = vcmp.eq.f32.partialorder %v1101, inf
        %v1332 = vsel %vm1331, %v1101, %v1330
        %vm1333 = vcmp.eq.f32.partialorder %v1101, 0.0
        %v1334 = vand.u32 %v1101, 2147483648
        %v1335 = vsel %vm1333, %v1334, %v1332
        %v1336 = vrsqrt.pop %v1103
        %v1337 = vmul.f32 %v1336, %v1103
        %v1338 = vmul.f32 %v1337, %v1336
        %v1339 = vmul.f32 0.5, %v1338
        %v1340 = vsub.f32 1.5, %v1339
        %v1341 = vmul.f32 %v1336, %v1340
        %v1342 = vmul.f32 %v1103, %v1341
        %vm1343 = vcmp.eq.f32.partialorder %v1103, inf
        %v1344 = vsel %vm1343, %v1103, %v1342
        %vm1345 = vcmp.eq.f32.partialorder %v1103, 0.0
        %v1346 = vand.u32 %v1103, 2147483648
        %v1347 = vsel %vm1345, %v1346, %v1344
        %v1348 = vrsqrt.pop %v1105
        %v1349 = vmul.f32 %v1348, %v1105
        %v1350 = vmul.f32 %v1349, %v1348
        %v1351 = vmul.f32 0.5, %v1350
        %v1352 = vsub.f32 1.5, %v1351
        %v1353 = vmul.f32 %v1348, %v1352
        %v1354 = vmul.f32 %v1105, %v1353
        %vm1355 = vcmp.eq.f32.partialorder %v1105, inf
        %v1356 = vsel %vm1355, %v1105, %v1354
        %vm1357 = vcmp.eq.f32.partialorder %v1105, 0.0
        %v1358 = vand.u32 %v1105, 2147483648
        %v1359 = vsel %vm1357, %v1358, %v1356
        %v1360 = vrsqrt.pop %v1107
        %v1361 = vmul.f32 %v1360, %v1107
        %v1362 = vmul.f32 %v1361, %v1360
        %v1363 = vmul.f32 0.5, %v1362
        %v1364 = vsub.f32 1.5, %v1363
        %v1365 = vmul.f32 %v1360, %v1364
        %v1366 = vmul.f32 %v1107, %v1365
        %vm1367 = vcmp.eq.f32.partialorder %v1107, inf
        %v1368 = vsel %vm1367, %v1107, %v1366
        %vm1369 = vcmp.eq.f32.partialorder %v1107, 0.0
        %v1370 = vand.u32 %v1107, 2147483648
        %v1371 = vsel %vm1369, %v1370, %v1368
        %v1372 = vrsqrt.pop %v1109
        %v1373 = vmul.f32 %v1372, %v1109
        %v1374 = vmul.f32 %v1373, %v1372
        %v1375 = vmul.f32 0.5, %v1374
        %v1376 = vsub.f32 1.5, %v1375
        %v1377 = vmul.f32 %v1372, %v1376
        %v1378 = vmul.f32 %v1109, %v1377
        %vm1379 = vcmp.eq.f32.partialorder %v1109, inf
        %v1380 = vsel %vm1379, %v1109, %v1378
        %vm1381 = vcmp.eq.f32.partialorder %v1109, 0.0
        %v1382 = vand.u32 %v1109, 2147483648
        %v1383 = vsel %vm1381, %v1382, %v1380
        %v1384 = vrsqrt.pop %v1111
        %v1385 = vmul.f32 %v1384, %v1111
        %v1386 = vmul.f32 %v1385, %v1384
        %v1387 = vmul.f32 0.5, %v1386
        %v1388 = vsub.f32 1.5, %v1387
        %v1389 = vmul.f32 %v1384, %v1388
        %v1390 = vmul.f32 %v1111, %v1389
        %vm1391 = vcmp.eq.f32.partialorder %v1111, inf
        %v1392 = vsel %vm1391, %v1111, %v1390
        %vm1393 = vcmp.eq.f32.partialorder %v1111, 0.0
        %v1394 = vand.u32 %v1111, 2147483648
        %v1395 = vsel %vm1393, %v1394, %v1392
        %v1396 = vrsqrt.pop %v1113
        %v1397 = vmul.f32 %v1396, %v1113
        %v1398 = vmul.f32 %v1397, %v1396
        %v1399 = vmul.f32 0.5, %v1398
        %v1400 = vsub.f32 1.5, %v1399
        %v1401 = vmul.f32 %v1396, %v1400
        %v1402 = vmul.f32 %v1113, %v1401
        %vm1403 = vcmp.eq.f32.partialorder %v1113, inf
        %v1404 = vsel %vm1403, %v1113, %v1402
        %vm1405 = vcmp.eq.f32.partialorder %v1113, 0.0
        %v1406 = vand.u32 %v1113, 2147483648
        %v1407 = vsel %vm1405, %v1406, %v1404
        %v1408 = vrsqrt.pop %v1115
        %v1409 = vmul.f32 %v1408, %v1115
        %v1410 = vmul.f32 %v1409, %v1408
        %v1411 = vmul.f32 0.5, %v1410
        %v1412 = vsub.f32 1.5, %v1411
        %v1413 = vmul.f32 %v1408, %v1412
        %v1414 = vmul.f32 %v1115, %v1413
        %vm1415 = vcmp.eq.f32.partialorder %v1115, inf
        %v1416 = vsel %vm1415, %v1115, %v1414
        %vm1417 = vcmp.eq.f32.partialorder %v1115, 0.0
        %v1418 = vand.u32 %v1115, 2147483648
        %v1419 = vsel %vm1417, %v1418, %v1416
        %v1420 = vrsqrt.pop %v1117
        %v1421 = vmul.f32 %v1420, %v1117
        %v1422 = vmul.f32 %v1421, %v1420
        %v1423 = vmul.f32 0.5, %v1422
        %v1424 = vsub.f32 1.5, %v1423
        %v1425 = vmul.f32 %v1420, %v1424
        %v1426 = vmul.f32 %v1117, %v1425
        %vm1427 = vcmp.eq.f32.partialorder %v1117, inf
        %v1428 = vsel %vm1427, %v1117, %v1426
        %vm1429 = vcmp.eq.f32.partialorder %v1117, 0.0
        %v1430 = vand.u32 %v1117, 2147483648
        %v1431 = vsel %vm1429, %v1430, %v1428
        %v1432 = vrsqrt.pop %v1119
        %v1433 = vmul.f32 %v1432, %v1119
        %v1434 = vmul.f32 %v1433, %v1432
        %v1435 = vmul.f32 0.5, %v1434
        %v1436 = vsub.f32 1.5, %v1435
        %v1437 = vmul.f32 %v1432, %v1436
        %v1438 = vmul.f32 %v1119, %v1437
        %vm1439 = vcmp.eq.f32.partialorder %v1119, inf
        %v1440 = vsel %vm1439, %v1119, %v1438
        %vm1441 = vcmp.eq.f32.partialorder %v1119, 0.0
        %v1442 = vand.u32 %v1119, 2147483648
        %v1443 = vsel %vm1441, %v1442, %v1440
        %v1444 = vrsqrt.pop %v1121
        %v1445 = vmul.f32 %v1444, %v1121
        %v1446 = vmul.f32 %v1445, %v1444
        %v1447 = vmul.f32 0.5, %v1446
        %v1448 = vsub.f32 1.5, %v1447
        %v1449 = vmul.f32 %v1444, %v1448
        %v1450 = vmul.f32 %v1121, %v1449
        %vm1451 = vcmp.eq.f32.partialorder %v1121, inf
        %v1452 = vsel %vm1451, %v1121, %v1450
        %vm1453 = vcmp.eq.f32.partialorder %v1121, 0.0
        %v1454 = vand.u32 %v1121, 2147483648
        %v1455 = vsel %vm1453, %v1454, %v1452
        %v1456 = vrsqrt.pop %v1123
        %v1457 = vmul.f32 %v1456, %v1123
        %v1458 = vmul.f32 %v1457, %v1456
        %v1459 = vmul.f32 0.5, %v1458
        %v1460 = vsub.f32 1.5, %v1459
        %v1461 = vmul.f32 %v1456, %v1460
        %v1462 = vmul.f32 %v1123, %v1461
        %vm1463 = vcmp.eq.f32.partialorder %v1123, inf
        %v1464 = vsel %vm1463, %v1123, %v1462
        %vm1465 = vcmp.eq.f32.partialorder %v1123, 0.0
        %v1466 = vand.u32 %v1123, 2147483648
        %v1467 = vsel %vm1465, %v1466, %v1464
        %v1468 = vrsqrt.pop %v1125
        %v1469 = vmul.f32 %v1468, %v1125
        %v1470 = vmul.f32 %v1469, %v1468
        %v1471 = vmul.f32 0.5, %v1470
        %v1472 = vsub.f32 1.5, %v1471
        %v1473 = vmul.f32 %v1468, %v1472
        %v1474 = vmul.f32 %v1125, %v1473
        %vm1475 = vcmp.eq.f32.partialorder %v1125, inf
        %v1476 = vsel %vm1475, %v1125, %v1474
        %vm1477 = vcmp.eq.f32.partialorder %v1125, 0.0
        %v1478 = vand.u32 %v1125, 2147483648
        %v1479 = vsel %vm1477, %v1478, %v1476
        %v1480 = vrsqrt.pop %v1127
        %v1481 = vmul.f32 %v1480, %v1127
        %v1482 = vmul.f32 %v1481, %v1480
        %v1483 = vmul.f32 0.5, %v1482
        %v1484 = vsub.f32 1.5, %v1483
        %v1485 = vmul.f32 %v1480, %v1484
        %v1486 = vmul.f32 %v1127, %v1485
        %vm1487 = vcmp.eq.f32.partialorder %v1127, inf
        %v1488 = vsel %vm1487, %v1127, %v1486
        %vm1489 = vcmp.eq.f32.partialorder %v1127, 0.0
        %v1490 = vand.u32 %v1127, 2147483648
        %v1491 = vsel %vm1489, %v1490, %v1488
        %v1492 = vrsqrt.pop %v1129
        %v1493 = vmul.f32 %v1492, %v1129
        %v1494 = vmul.f32 %v1493, %v1492
        %v1495 = vmul.f32 0.5, %v1494
        %v1496 = vsub.f32 1.5, %v1495
        %v1497 = vmul.f32 %v1492, %v1496
        %v1498 = vmul.f32 %v1129, %v1497
        %vm1499 = vcmp.eq.f32.partialorder %v1129, inf
        %v1500 = vsel %vm1499, %v1129, %v1498
        %vm1501 = vcmp.eq.f32.partialorder %v1129, 0.0
        %v1502 = vand.u32 %v1129, 2147483648
        %v1503 = vsel %vm1501, %v1502, %v1500
        %v1504 = vrsqrt.pop %v1131
        %v1505 = vmul.f32 %v1504, %v1131
        %v1506 = vmul.f32 %v1505, %v1504
        %v1507 = vmul.f32 0.5, %v1506
        %v1508 = vsub.f32 1.5, %v1507
        %v1509 = vmul.f32 %v1504, %v1508
        %v1510 = vmul.f32 %v1131, %v1509
        %vm1511 = vcmp.eq.f32.partialorder %v1131, inf
        %v1512 = vsel %vm1511, %v1131, %v1510
        %vm1513 = vcmp.eq.f32.partialorder %v1131, 0.0
        %v1514 = vand.u32 %v1131, 2147483648
        %v1515 = vsel %vm1513, %v1514, %v1512
        %v1516 = vmul.f32 %v1004, %v1004
        %v1517 = vmul.f32 %v1005, %v1005
        %v1518 = vmul.f32 %v1006, %v1006
        %v1519 = vmul.f32 %v1007, %v1007
        %v1520 = vmul.f32 %v1008, %v1008
        %v1521 = vmul.f32 %v1009, %v1009
        %v1522 = vmul.f32 %v1010, %v1010
        %v1523 = vmul.f32 %v1011, %v1011
        %v1524 = vmul.f32 %v1012, %v1012
        %v1525 = vmul.f32 %v1013, %v1013
        %v1526 = vmul.f32 %v1014, %v1014
        %v1527 = vmul.f32 %v1015, %v1015
        %v1528 = vmul.f32 %v1016, %v1016
        %v1529 = vmul.f32 %v1017, %v1017
        %v1530 = vmul.f32 %v1018, %v1018
        %v1531 = vmul.f32 %v1019, %v1019
        %v1532 = vmul.f32 %v1020, %v1020
        %v1533 = vmul.f32 %v1021, %v1021
        %v1534 = vmul.f32 %v1022, %v1022
        %v1535 = vmul.f32 %v1023, %v1023
        %v1536 = vmul.f32 %v1024, %v1024
        %v1537 = vmul.f32 %v1025, %v1025
        %v1538 = vmul.f32 %v1026, %v1026
        %v1539 = vmul.f32 %v1027, %v1027
        %v1540 = vmul.f32 %v1028, %v1028
        %v1541 = vmul.f32 %v1029, %v1029
        %v1542 = vmul.f32 %v1030, %v1030
        %v1543 = vmul.f32 %v1031, %v1031
        %v1544 = vmul.f32 %v1032, %v1032
        %v1545 = vmul.f32 %v1033, %v1033
        %v1546 = vmul.f32 %v1034, %v1034
        %v1547 = vmul.f32 %v1035, %v1035
        %1548 = vadd.xlane.f32.xlu0 %v1516
        %v1549 = vpop.xlane.xlu0 %1548
        %1550 = vadd.xlane.f32.xlu0 %v1517
        %v1551 = vpop.xlane.xlu0 %1550
        %1552 = vadd.xlane.f32.xlu0 %v1518
        %v1553 = vpop.xlane.xlu0 %1552
        %1554 = vadd.xlane.f32.xlu0 %v1519
        %v1555 = vpop.xlane.xlu0 %1554
        %1556 = vadd.xlane.f32.xlu0 %v1520
        %v1557 = vpop.xlane.xlu0 %1556
        %1558 = vadd.xlane.f32.xlu0 %v1521
        %v1559 = vpop.xlane.xlu0 %1558
        %1560 = vadd.xlane.f32.xlu0 %v1522
        %v1561 = vpop.xlane.xlu0 %1560
        %1562 = vadd.xlane.f32.xlu0 %v1523
        %v1563 = vpop.xlane.xlu0 %1562
        %1564 = vadd.xlane.f32.xlu0 %v1524
        %v1565 = vpop.xlane.xlu0 %1564
        %1566 = vadd.xlane.f32.xlu0 %v1525
        %v1567 = vpop.xlane.xlu0 %1566
        %1568 = vadd.xlane.f32.xlu0 %v1526
        %v1569 = vpop.xlane.xlu0 %1568
        %1570 = vadd.xlane.f32.xlu0 %v1527
        %v1571 = vpop.xlane.xlu0 %1570
        %1572 = vadd.xlane.f32.xlu0 %v1528
        %v1573 = vpop.xlane.xlu0 %1572
        %1574 = vadd.xlane.f32.xlu0 %v1529
        %v1575 = vpop.xlane.xlu0 %1574
        %1576 = vadd.xlane.f32.xlu0 %v1530
        %v1577 = vpop.xlane.xlu0 %1576
        %1578 = vadd.xlane.f32.xlu0 %v1531
        %v1579 = vpop.xlane.xlu0 %1578
        %1580 = vadd.xlane.f32.xlu0 %v1532
        %v1581 = vpop.xlane.xlu0 %1580
        %1582 = vadd.xlane.f32.xlu0 %v1533
        %v1583 = vpop.xlane.xlu0 %1582
        %1584 = vadd.xlane.f32.xlu0 %v1534
        %v1585 = vpop.xlane.xlu0 %1584
        %1586 = vadd.xlane.f32.xlu0 %v1535
        %v1587 = vpop.xlane.xlu0 %1586
        %1588 = vadd.xlane.f32.xlu0 %v1536
        %v1589 = vpop.xlane.xlu0 %1588
        %1590 = vadd.xlane.f32.xlu0 %v1537
        %v1591 = vpop.xlane.xlu0 %1590
        %1592 = vadd.xlane.f32.xlu0 %v1538
        %v1593 = vpop.xlane.xlu0 %1592
        %1594 = vadd.xlane.f32.xlu0 %v1539
        %v1595 = vpop.xlane.xlu0 %1594
        %1596 = vadd.xlane.f32.xlu0 %v1540
        %v1597 = vpop.xlane.xlu0 %1596
        %1598 = vadd.xlane.f32.xlu0 %v1541
        %v1599 = vpop.xlane.xlu0 %1598
        %1600 = vadd.xlane.f32.xlu0 %v1542
        %v1601 = vpop.xlane.xlu0 %1600
        %1602 = vadd.xlane.f32.xlu0 %v1543
        %v1603 = vpop.xlane.xlu0 %1602
        %1604 = vadd.xlane.f32.xlu0 %v1544
        %v1605 = vpop.xlane.xlu0 %1604
        %1606 = vadd.xlane.f32.xlu0 %v1545
        %v1607 = vpop.xlane.xlu0 %1606
        %1608 = vadd.xlane.f32.xlu0 %v1546
        %v1609 = vpop.xlane.xlu0 %1608
        %1610 = vadd.xlane.f32.xlu0 %v1547
        %v1611 = vpop.xlane.xlu0 %1610
        %v1612 = vrsqrt.pop %v1549
        %v1613 = vmul.f32 %v1612, %v1549
        %v1614 = vmul.f32 %v1613, %v1612
        %v1615 = vmul.f32 0.5, %v1614
        %v1616 = vsub.f32 1.5, %v1615
        %v1617 = vmul.f32 %v1612, %v1616
        %v1618 = vmul.f32 %v1549, %v1617
        %vm1619 = vcmp.eq.f32.partialorder %v1549, inf
        %v1620 = vsel %vm1619, %v1549, %v1618
        %vm1621 = vcmp.eq.f32.partialorder %v1549, 0.0
        %v1622 = vand.u32 %v1549, 2147483648
        %v1623 = vsel %vm1621, %v1622, %v1620
        %v1624 = vrsqrt.pop %v1551
        %v1625 = vmul.f32 %v1624, %v1551
        %v1626 = vmul.f32 %v1625, %v1624
        %v1627 = vmul.f32 0.5, %v1626
        %v1628 = vsub.f32 1.5, %v1627
        %v1629 = vmul.f32 %v1624, %v1628
        %v1630 = vmul.f32 %v1551, %v1629
        %vm1631 = vcmp.eq.f32.partialorder %v1551, inf
        %v1632 = vsel %vm1631, %v1551, %v1630
        %vm1633 = vcmp.eq.f32.partialorder %v1551, 0.0
        %v1634 = vand.u32 %v1551, 2147483648
        %v1635 = vsel %vm1633, %v1634, %v1632
        %v1636 = vrsqrt.pop %v1553
        %v1637 = vmul.f32 %v1636, %v1553
        %v1638 = vmul.f32 %v1637, %v1636
        %v1639 = vmul.f32 0.5, %v1638
        %v1640 = vsub.f32 1.5, %v1639
        %v1641 = vmul.f32 %v1636, %v1640
        %v1642 = vmul.f32 %v1553, %v1641
        %vm1643 = vcmp.eq.f32.partialorder %v1553, inf
        %v1644 = vsel %vm1643, %v1553, %v1642
        %vm1645 = vcmp.eq.f32.partialorder %v1553, 0.0
        %v1646 = vand.u32 %v1553, 2147483648
        %v1647 = vsel %vm1645, %v1646, %v1644
        %v1648 = vrsqrt.pop %v1555
        %v1649 = vmul.f32 %v1648, %v1555
        %v1650 = vmul.f32 %v1649, %v1648
        %v1651 = vmul.f32 0.5, %v1650
        %v1652 = vsub.f32 1.5, %v1651
        %v1653 = vmul.f32 %v1648, %v1652
        %v1654 = vmul.f32 %v1555, %v1653
        %vm1655 = vcmp.eq.f32.partialorder %v1555, inf
        %v1656 = vsel %vm1655, %v1555, %v1654
        %vm1657 = vcmp.eq.f32.partialorder %v1555, 0.0
        %v1658 = vand.u32 %v1555, 2147483648
        %v1659 = vsel %vm1657, %v1658, %v1656
        %v1660 = vrsqrt.pop %v1557
        %v1661 = vmul.f32 %v1660, %v1557
        %v1662 = vmul.f32 %v1661, %v1660
        %v1663 = vmul.f32 0.5, %v1662
        %v1664 = vsub.f32 1.5, %v1663
        %v1665 = vmul.f32 %v1660, %v1664
        %v1666 = vmul.f32 %v1557, %v1665
        %vm1667 = vcmp.eq.f32.partialorder %v1557, inf
        %v1668 = vsel %vm1667, %v1557, %v1666
        %vm1669 = vcmp.eq.f32.partialorder %v1557, 0.0
        %v1670 = vand.u32 %v1557, 2147483648
        %v1671 = vsel %vm1669, %v1670, %v1668
        %v1672 = vrsqrt.pop %v1559
        %v1673 = vmul.f32 %v1672, %v1559
        %v1674 = vmul.f32 %v1673, %v1672
        %v1675 = vmul.f32 0.5, %v1674
        %v1676 = vsub.f32 1.5, %v1675
        %v1677 = vmul.f32 %v1672, %v1676
        %v1678 = vmul.f32 %v1559, %v1677
        %vm1679 = vcmp.eq.f32.partialorder %v1559, inf
        %v1680 = vsel %vm1679, %v1559, %v1678
        %vm1681 = vcmp.eq.f32.partialorder %v1559, 0.0
        %v1682 = vand.u32 %v1559, 2147483648
        %v1683 = vsel %vm1681, %v1682, %v1680
        %v1684 = vrsqrt.pop %v1561
        %v1685 = vmul.f32 %v1684, %v1561
        %v1686 = vmul.f32 %v1685, %v1684
        %v1687 = vmul.f32 0.5, %v1686
        %v1688 = vsub.f32 1.5, %v1687
        %v1689 = vmul.f32 %v1684, %v1688
        %v1690 = vmul.f32 %v1561, %v1689
        %vm1691 = vcmp.eq.f32.partialorder %v1561, inf
        %v1692 = vsel %vm1691, %v1561, %v1690
        %vm1693 = vcmp.eq.f32.partialorder %v1561, 0.0
        %v1694 = vand.u32 %v1561, 2147483648
        %v1695 = vsel %vm1693, %v1694, %v1692
        %v1696 = vrsqrt.pop %v1563
        %v1697 = vmul.f32 %v1696, %v1563
        %v1698 = vmul.f32 %v1697, %v1696
        %v1699 = vmul.f32 0.5, %v1698
        %v1700 = vsub.f32 1.5, %v1699
        %v1701 = vmul.f32 %v1696, %v1700
        %v1702 = vmul.f32 %v1563, %v1701
        %vm1703 = vcmp.eq.f32.partialorder %v1563, inf
        %v1704 = vsel %vm1703, %v1563, %v1702
        %vm1705 = vcmp.eq.f32.partialorder %v1563, 0.0
        %v1706 = vand.u32 %v1563, 2147483648
        %v1707 = vsel %vm1705, %v1706, %v1704
        %v1708 = vrsqrt.pop %v1565
        %v1709 = vmul.f32 %v1708, %v1565
        %v1710 = vmul.f32 %v1709, %v1708
        %v1711 = vmul.f32 0.5, %v1710
        %v1712 = vsub.f32 1.5, %v1711
        %v1713 = vmul.f32 %v1708, %v1712
        %v1714 = vmul.f32 %v1565, %v1713
        %vm1715 = vcmp.eq.f32.partialorder %v1565, inf
        %v1716 = vsel %vm1715, %v1565, %v1714
        %vm1717 = vcmp.eq.f32.partialorder %v1565, 0.0
        %v1718 = vand.u32 %v1565, 2147483648
        %v1719 = vsel %vm1717, %v1718, %v1716
        %v1720 = vrsqrt.pop %v1567
        %v1721 = vmul.f32 %v1720, %v1567
        %v1722 = vmul.f32 %v1721, %v1720
        %v1723 = vmul.f32 0.5, %v1722
        %v1724 = vsub.f32 1.5, %v1723
        %v1725 = vmul.f32 %v1720, %v1724
        %v1726 = vmul.f32 %v1567, %v1725
        %vm1727 = vcmp.eq.f32.partialorder %v1567, inf
        %v1728 = vsel %vm1727, %v1567, %v1726
        %vm1729 = vcmp.eq.f32.partialorder %v1567, 0.0
        %v1730 = vand.u32 %v1567, 2147483648
        %v1731 = vsel %vm1729, %v1730, %v1728
        %v1732 = vrsqrt.pop %v1569
        %v1733 = vmul.f32 %v1732, %v1569
        %v1734 = vmul.f32 %v1733, %v1732
        %v1735 = vmul.f32 0.5, %v1734
        %v1736 = vsub.f32 1.5, %v1735
        %v1737 = vmul.f32 %v1732, %v1736
        %v1738 = vmul.f32 %v1569, %v1737
        %vm1739 = vcmp.eq.f32.partialorder %v1569, inf
        %v1740 = vsel %vm1739, %v1569, %v1738
        %vm1741 = vcmp.eq.f32.partialorder %v1569, 0.0
        %v1742 = vand.u32 %v1569, 2147483648
        %v1743 = vsel %vm1741, %v1742, %v1740
        %v1744 = vrsqrt.pop %v1571
        %v1745 = vmul.f32 %v1744, %v1571
        %v1746 = vmul.f32 %v1745, %v1744
        %v1747 = vmul.f32 0.5, %v1746
        %v1748 = vsub.f32 1.5, %v1747
        %v1749 = vmul.f32 %v1744, %v1748
        %v1750 = vmul.f32 %v1571, %v1749
        %vm1751 = vcmp.eq.f32.partialorder %v1571, inf
        %v1752 = vsel %vm1751, %v1571, %v1750
        %vm1753 = vcmp.eq.f32.partialorder %v1571, 0.0
        %v1754 = vand.u32 %v1571, 2147483648
        %v1755 = vsel %vm1753, %v1754, %v1752
        %v1756 = vrsqrt.pop %v1573
        %v1757 = vmul.f32 %v1756, %v1573
        %v1758 = vmul.f32 %v1757, %v1756
        %v1759 = vmul.f32 0.5, %v1758
        %v1760 = vsub.f32 1.5, %v1759
        %v1761 = vmul.f32 %v1756, %v1760
        %v1762 = vmul.f32 %v1573, %v1761
        %vm1763 = vcmp.eq.f32.partialorder %v1573, inf
        %v1764 = vsel %vm1763, %v1573, %v1762
        %vm1765 = vcmp.eq.f32.partialorder %v1573, 0.0
        %v1766 = vand.u32 %v1573, 2147483648
        %v1767 = vsel %vm1765, %v1766, %v1764
        %v1768 = vrsqrt.pop %v1575
        %v1769 = vmul.f32 %v1768, %v1575
        %v1770 = vmul.f32 %v1769, %v1768
        %v1771 = vmul.f32 0.5, %v1770
        %v1772 = vsub.f32 1.5, %v1771
        %v1773 = vmul.f32 %v1768, %v1772
        %v1774 = vmul.f32 %v1575, %v1773
        %vm1775 = vcmp.eq.f32.partialorder %v1575, inf
        %v1776 = vsel %vm1775, %v1575, %v1774
        %vm1777 = vcmp.eq.f32.partialorder %v1575, 0.0
        %v1778 = vand.u32 %v1575, 2147483648
        %v1779 = vsel %vm1777, %v1778, %v1776
        %v1780 = vrsqrt.pop %v1577
        %v1781 = vmul.f32 %v1780, %v1577
        %v1782 = vmul.f32 %v1781, %v1780
        %v1783 = vmul.f32 0.5, %v1782
        %v1784 = vsub.f32 1.5, %v1783
        %v1785 = vmul.f32 %v1780, %v1784
        %v1786 = vmul.f32 %v1577, %v1785
        %vm1787 = vcmp.eq.f32.partialorder %v1577, inf
        %v1788 = vsel %vm1787, %v1577, %v1786
        %vm1789 = vcmp.eq.f32.partialorder %v1577, 0.0
        %v1790 = vand.u32 %v1577, 2147483648
        %v1791 = vsel %vm1789, %v1790, %v1788
        %v1792 = vrsqrt.pop %v1579
        %v1793 = vmul.f32 %v1792, %v1579
        %v1794 = vmul.f32 %v1793, %v1792
        %v1795 = vmul.f32 0.5, %v1794
        %v1796 = vsub.f32 1.5, %v1795
        %v1797 = vmul.f32 %v1792, %v1796
        %v1798 = vmul.f32 %v1579, %v1797
        %vm1799 = vcmp.eq.f32.partialorder %v1579, inf
        %v1800 = vsel %vm1799, %v1579, %v1798
        %vm1801 = vcmp.eq.f32.partialorder %v1579, 0.0
        %v1802 = vand.u32 %v1579, 2147483648
        %v1803 = vsel %vm1801, %v1802, %v1800
        %v1804 = vrsqrt.pop %v1581
        %v1805 = vmul.f32 %v1804, %v1581
        %v1806 = vmul.f32 %v1805, %v1804
        %v1807 = vmul.f32 0.5, %v1806
        %v1808 = vsub.f32 1.5, %v1807
        %v1809 = vmul.f32 %v1804, %v1808
        %v1810 = vmul.f32 %v1581, %v1809
        %vm1811 = vcmp.eq.f32.partialorder %v1581, inf
        %v1812 = vsel %vm1811, %v1581, %v1810
        %vm1813 = vcmp.eq.f32.partialorder %v1581, 0.0
        %v1814 = vand.u32 %v1581, 2147483648
        %v1815 = vsel %vm1813, %v1814, %v1812
        %v1816 = vrsqrt.pop %v1583
        %v1817 = vmul.f32 %v1816, %v1583
        %v1818 = vmul.f32 %v1817, %v1816
        %v1819 = vmul.f32 0.5, %v1818
        %v1820 = vsub.f32 1.5, %v1819
        %v1821 = vmul.f32 %v1816, %v1820
        %v1822 = vmul.f32 %v1583, %v1821
        %vm1823 = vcmp.eq.f32.partialorder %v1583, inf
        %v1824 = vsel %vm1823, %v1583, %v1822
        %vm1825 = vcmp.eq.f32.partialorder %v1583, 0.0
        %v1826 = vand.u32 %v1583, 2147483648
        %v1827 = vsel %vm1825, %v1826, %v1824
        %v1828 = vrsqrt.pop %v1585
        %v1829 = vmul.f32 %v1828, %v1585
        %v1830 = vmul.f32 %v1829, %v1828
        %v1831 = vmul.f32 0.5, %v1830
        %v1832 = vsub.f32 1.5, %v1831
        %v1833 = vmul.f32 %v1828, %v1832
        %v1834 = vmul.f32 %v1585, %v1833
        %vm1835 = vcmp.eq.f32.partialorder %v1585, inf
        %v1836 = vsel %vm1835, %v1585, %v1834
        %vm1837 = vcmp.eq.f32.partialorder %v1585, 0.0
        %v1838 = vand.u32 %v1585, 2147483648
        %v1839 = vsel %vm1837, %v1838, %v1836
        %v1840 = vrsqrt.pop %v1587
        %v1841 = vmul.f32 %v1840, %v1587
        %v1842 = vmul.f32 %v1841, %v1840
        %v1843 = vmul.f32 0.5, %v1842
        %v1844 = vsub.f32 1.5, %v1843
        %v1845 = vmul.f32 %v1840, %v1844
        %v1846 = vmul.f32 %v1587, %v1845
        %vm1847 = vcmp.eq.f32.partialorder %v1587, inf
        %v1848 = vsel %vm1847, %v1587, %v1846
        %vm1849 = vcmp.eq.f32.partialorder %v1587, 0.0
        %v1850 = vand.u32 %v1587, 2147483648
        %v1851 = vsel %vm1849, %v1850, %v1848
        %v1852 = vrsqrt.pop %v1589
        %v1853 = vmul.f32 %v1852, %v1589
        %v1854 = vmul.f32 %v1853, %v1852
        %v1855 = vmul.f32 0.5, %v1854
        %v1856 = vsub.f32 1.5, %v1855
        %v1857 = vmul.f32 %v1852, %v1856
        %v1858 = vmul.f32 %v1589, %v1857
        %vm1859 = vcmp.eq.f32.partialorder %v1589, inf
        %v1860 = vsel %vm1859, %v1589, %v1858
        %vm1861 = vcmp.eq.f32.partialorder %v1589, 0.0
        %v1862 = vand.u32 %v1589, 2147483648
        %v1863 = vsel %vm1861, %v1862, %v1860
        %v1864 = vrsqrt.pop %v1591
        %v1865 = vmul.f32 %v1864, %v1591
        %v1866 = vmul.f32 %v1865, %v1864
        %v1867 = vmul.f32 0.5, %v1866
        %v1868 = vsub.f32 1.5, %v1867
        %v1869 = vmul.f32 %v1864, %v1868
        %v1870 = vmul.f32 %v1591, %v1869
        %vm1871 = vcmp.eq.f32.partialorder %v1591, inf
        %v1872 = vsel %vm1871, %v1591, %v1870
        %vm1873 = vcmp.eq.f32.partialorder %v1591, 0.0
        %v1874 = vand.u32 %v1591, 2147483648
        %v1875 = vsel %vm1873, %v1874, %v1872
        %v1876 = vrsqrt.pop %v1593
        %v1877 = vmul.f32 %v1876, %v1593
        %v1878 = vmul.f32 %v1877, %v1876
        %v1879 = vmul.f32 0.5, %v1878
        %v1880 = vsub.f32 1.5, %v1879
        %v1881 = vmul.f32 %v1876, %v1880
        %v1882 = vmul.f32 %v1593, %v1881
        %vm1883 = vcmp.eq.f32.partialorder %v1593, inf
        %v1884 = vsel %vm1883, %v1593, %v1882
        %vm1885 = vcmp.eq.f32.partialorder %v1593, 0.0
        %v1886 = vand.u32 %v1593, 2147483648
        %v1887 = vsel %vm1885, %v1886, %v1884
        %v1888 = vrsqrt.pop %v1595
        %v1889 = vmul.f32 %v1888, %v1595
        %v1890 = vmul.f32 %v1889, %v1888
        %v1891 = vmul.f32 0.5, %v1890
        %v1892 = vsub.f32 1.5, %v1891
        %v1893 = vmul.f32 %v1888, %v1892
        %v1894 = vmul.f32 %v1595, %v1893
        %vm1895 = vcmp.eq.f32.partialorder %v1595, inf
        %v1896 = vsel %vm1895, %v1595, %v1894
        %vm1897 = vcmp.eq.f32.partialorder %v1595, 0.0
        %v1898 = vand.u32 %v1595, 2147483648
        %v1899 = vsel %vm1897, %v1898, %v1896
        %v1900 = vrsqrt.pop %v1597
        %v1901 = vmul.f32 %v1900, %v1597
        %v1902 = vmul.f32 %v1901, %v1900
        %v1903 = vmul.f32 0.5, %v1902
        %v1904 = vsub.f32 1.5, %v1903
        %v1905 = vmul.f32 %v1900, %v1904
        %v1906 = vmul.f32 %v1597, %v1905
        %vm1907 = vcmp.eq.f32.partialorder %v1597, inf
        %v1908 = vsel %vm1907, %v1597, %v1906
        %vm1909 = vcmp.eq.f32.partialorder %v1597, 0.0
        %v1910 = vand.u32 %v1597, 2147483648
        %v1911 = vsel %vm1909, %v1910, %v1908
        %v1912 = vrsqrt.pop %v1599
        %v1913 = vmul.f32 %v1912, %v1599
        %v1914 = vmul.f32 %v1913, %v1912
        %v1915 = vmul.f32 0.5, %v1914
        %v1916 = vsub.f32 1.5, %v1915
        %v1917 = vmul.f32 %v1912, %v1916
        %v1918 = vmul.f32 %v1599, %v1917
        %vm1919 = vcmp.eq.f32.partialorder %v1599, inf
        %v1920 = vsel %vm1919, %v1599, %v1918
        %vm1921 = vcmp.eq.f32.partialorder %v1599, 0.0
        %v1922 = vand.u32 %v1599, 2147483648
        %v1923 = vsel %vm1921, %v1922, %v1920
        %v1924 = vrsqrt.pop %v1601
        %v1925 = vmul.f32 %v1924, %v1601
        %v1926 = vmul.f32 %v1925, %v1924
        %v1927 = vmul.f32 0.5, %v1926
        %v1928 = vsub.f32 1.5, %v1927
        %v1929 = vmul.f32 %v1924, %v1928
        %v1930 = vmul.f32 %v1601, %v1929
        %vm1931 = vcmp.eq.f32.partialorder %v1601, inf
        %v1932 = vsel %vm1931, %v1601, %v1930
        %vm1933 = vcmp.eq.f32.partialorder %v1601, 0.0
        %v1934 = vand.u32 %v1601, 2147483648
        %v1935 = vsel %vm1933, %v1934, %v1932
        %v1936 = vrsqrt.pop %v1603
        %v1937 = vmul.f32 %v1936, %v1603
        %v1938 = vmul.f32 %v1937, %v1936
        %v1939 = vmul.f32 0.5, %v1938
        %v1940 = vsub.f32 1.5, %v1939
        %v1941 = vmul.f32 %v1936, %v1940
        %v1942 = vmul.f32 %v1603, %v1941
        %vm1943 = vcmp.eq.f32.partialorder %v1603, inf
        %v1944 = vsel %vm1943, %v1603, %v1942
        %vm1945 = vcmp.eq.f32.partialorder %v1603, 0.0
        %v1946 = vand.u32 %v1603, 2147483648
        %v1947 = vsel %vm1945, %v1946, %v1944
        %v1948 = vrsqrt.pop %v1605
        %v1949 = vmul.f32 %v1948, %v1605
        %v1950 = vmul.f32 %v1949, %v1948
        %v1951 = vmul.f32 0.5, %v1950
        %v1952 = vsub.f32 1.5, %v1951
        %v1953 = vmul.f32 %v1948, %v1952
        %v1954 = vmul.f32 %v1605, %v1953
        %vm1955 = vcmp.eq.f32.partialorder %v1605, inf
        %v1956 = vsel %vm1955, %v1605, %v1954
        %vm1957 = vcmp.eq.f32.partialorder %v1605, 0.0
        %v1958 = vand.u32 %v1605, 2147483648
        %v1959 = vsel %vm1957, %v1958, %v1956
        %v1960 = vrsqrt.pop %v1607
        %v1961 = vmul.f32 %v1960, %v1607
        %v1962 = vmul.f32 %v1961, %v1960
        %v1963 = vmul.f32 0.5, %v1962
        %v1964 = vsub.f32 1.5, %v1963
        %v1965 = vmul.f32 %v1960, %v1964
        %v1966 = vmul.f32 %v1607, %v1965
        %vm1967 = vcmp.eq.f32.partialorder %v1607, inf
        %v1968 = vsel %vm1967, %v1607, %v1966
        %vm1969 = vcmp.eq.f32.partialorder %v1607, 0.0
        %v1970 = vand.u32 %v1607, 2147483648
        %v1971 = vsel %vm1969, %v1970, %v1968
        %v1972 = vrsqrt.pop %v1609
        %v1973 = vmul.f32 %v1972, %v1609
        %v1974 = vmul.f32 %v1973, %v1972
        %v1975 = vmul.f32 0.5, %v1974
        %v1976 = vsub.f32 1.5, %v1975
        %v1977 = vmul.f32 %v1972, %v1976
        %v1978 = vmul.f32 %v1609, %v1977
        %vm1979 = vcmp.eq.f32.partialorder %v1609, inf
        %v1980 = vsel %vm1979, %v1609, %v1978
        %vm1981 = vcmp.eq.f32.partialorder %v1609, 0.0
        %v1982 = vand.u32 %v1609, 2147483648
        %v1983 = vsel %vm1981, %v1982, %v1980
        %v1984 = vrsqrt.pop %v1611
        %v1985 = vmul.f32 %v1984, %v1611
        %v1986 = vmul.f32 %v1985, %v1984
        %v1987 = vmul.f32 0.5, %v1986
        %v1988 = vsub.f32 1.5, %v1987
        %v1989 = vmul.f32 %v1984, %v1988
        %v1990 = vmul.f32 %v1611, %v1989
        %vm1991 = vcmp.eq.f32.partialorder %v1611, inf
        %v1992 = vsel %vm1991, %v1611, %v1990
        %vm1993 = vcmp.eq.f32.partialorder %v1611, 0.0
        %v1994 = vand.u32 %v1611, 2147483648
        %v1995 = vsel %vm1993, %v1994, %v1992
        %v1996 = vsub.f32 %v1143, %v1623
        %v1997 = vsub.f32 %v1155, %v1635
        %v1998 = vsub.f32 %v1167, %v1647
        %v1999 = vsub.f32 %v1179, %v1659
        %v2000 = vsub.f32 %v1191, %v1671
        %v2001 = vsub.f32 %v1203, %v1683
        %v2002 = vsub.f32 %v1215, %v1695
        %v2003 = vsub.f32 %v1227, %v1707
        %v2004 = vsub.f32 %v1239, %v1719
        %v2005 = vsub.f32 %v1251, %v1731
        %v2006 = vsub.f32 %v1263, %v1743
        %v2007 = vsub.f32 %v1275, %v1755
        %v2008 = vsub.f32 %v1287, %v1767
        %v2009 = vsub.f32 %v1299, %v1779
        %v2010 = vsub.f32 %v1311, %v1791
        %v2011 = vsub.f32 %v1323, %v1803
        %v2012 = vsub.f32 %v1335, %v1815
        %v2013 = vsub.f32 %v1347, %v1827
        %v2014 = vsub.f32 %v1359, %v1839
        %v2015 = vsub.f32 %v1371, %v1851
        %v2016 = vsub.f32 %v1383, %v1863
        %v2017 = vsub.f32 %v1395, %v1875
        %v2018 = vsub.f32 %v1407, %v1887
        %v2019 = vsub.f32 %v1419, %v1899
        %v2020 = vsub.f32 %v1431, %v1911
        %v2021 = vsub.f32 %v1443, %v1923
        %v2022 = vsub.f32 %v1455, %v1935
        %v2023 = vsub.f32 %v1467, %v1947
        %v2024 = vsub.f32 %v1479, %v1959
        %v2025 = vsub.f32 %v1491, %v1971
        %v2026 = vsub.f32 %v1503, %v1983
        %v2027 = vsub.f32 %v1515, %v1995
        %v2028 = vadd.f32 %v1996, 1.0
        %v2029 = vadd.f32 %v1997, 1.0
        %v2030 = vadd.f32 %v1998, 1.0
        %v2031 = vadd.f32 %v1999, 1.0
        %v2032 = vadd.f32 %v2000, 1.0
        %v2033 = vadd.f32 %v2001, 1.0
        %v2034 = vadd.f32 %v2002, 1.0
        %v2035 = vadd.f32 %v2003, 1.0
        %v2036 = vadd.f32 %v2004, 1.0
        %v2037 = vadd.f32 %v2005, 1.0
        %v2038 = vadd.f32 %v2006, 1.0
        %v2039 = vadd.f32 %v2007, 1.0
        %v2040 = vadd.f32 %v2008, 1.0
        %v2041 = vadd.f32 %v2009, 1.0
        %v2042 = vadd.f32 %v2010, 1.0
        %v2043 = vadd.f32 %v2011, 1.0
        %v2044 = vadd.f32 %v2012, 1.0
        %v2045 = vadd.f32 %v2013, 1.0
        %v2046 = vadd.f32 %v2014, 1.0
        %v2047 = vadd.f32 %v2015, 1.0
        %v2048 = vadd.f32 %v2016, 1.0
        %v2049 = vadd.f32 %v2017, 1.0
        %v2050 = vadd.f32 %v2018, 1.0
        %v2051 = vadd.f32 %v2019, 1.0
        %v2052 = vadd.f32 %v2020, 1.0
        %v2053 = vadd.f32 %v2021, 1.0
        %v2054 = vadd.f32 %v2022, 1.0
        %v2055 = vadd.f32 %v2023, 1.0
        %v2056 = vadd.f32 %v2024, 1.0
        %v2057 = vadd.f32 %v2025, 1.0
        %v2058 = vadd.f32 %v2026, 1.0
        %v2059 = vadd.f32 %v2027, 1.0
        %v2060 = vmax.f32 %v2028, 0.0
        %v2061 = vmax.f32 %v2029, 0.0
        %v2062 = vmax.f32 %v2030, 0.0
        %v2063 = vmax.f32 %v2031, 0.0
        %v2064 = vmax.f32 %v2032, 0.0
        %v2065 = vmax.f32 %v2033, 0.0
        %v2066 = vmax.f32 %v2034, 0.0
        %v2067 = vmax.f32 %v2035, 0.0
        %v2068 = vmax.f32 %v2036, 0.0
        %v2069 = vmax.f32 %v2037, 0.0
        %v2070 = vmax.f32 %v2038, 0.0
        %v2071 = vmax.f32 %v2039, 0.0
        %v2072 = vmax.f32 %v2040, 0.0
        %v2073 = vmax.f32 %v2041, 0.0
        %v2074 = vmax.f32 %v2042, 0.0
        %v2075 = vmax.f32 %v2043, 0.0
        %v2076 = vmax.f32 %v2044, 0.0
        %v2077 = vmax.f32 %v2045, 0.0
        %v2078 = vmax.f32 %v2046, 0.0
        %v2079 = vmax.f32 %v2047, 0.0
        %v2080 = vmax.f32 %v2048, 0.0
        %v2081 = vmax.f32 %v2049, 0.0
        %v2082 = vmax.f32 %v2050, 0.0
        %v2083 = vmax.f32 %v2051, 0.0
        %v2084 = vmax.f32 %v2052, 0.0
        %v2085 = vmax.f32 %v2053, 0.0
        %v2086 = vmax.f32 %v2054, 0.0
        %v2087 = vmax.f32 %v2055, 0.0
        %v2088 = vmax.f32 %v2056, 0.0
        %v2089 = vmax.f32 %v2057, 0.0
        %v2090 = vmax.f32 %v2058, 0.0
        %v2091 = vmax.f32 %v2059, 0.0
        %s2092 = sadd.s32 %s36, %s37
        %s2093 = smul.u32 %s2092, 256
        %v2094 = vlaneseq
        %v2095 = vshrl.u32 %v2094, 7
        %v2096 = vadd.s32 %v2095, 8
        %v2097 = vadd.s32 %v2095, 16
        %v2098 = vadd.s32 %v2095, 24
        %v2099 = vadd.s32 %v2095, 32
        %v2100 = vadd.s32 %v2095, 40
        %v2101 = vadd.s32 %v2095, 48
        %v2102 = vadd.s32 %v2095, 56
        %v2103 = vadd.s32 %v2095, 64
        %v2104 = vadd.s32 %v2095, 72
        %v2105 = vadd.s32 %v2095, 80
        %v2106 = vadd.s32 %v2095, 88
        %v2107 = vadd.s32 %v2095, 96
        %v2108 = vadd.s32 %v2095, 104
        %v2109 = vadd.s32 %v2095, 112
        %v2110 = vadd.s32 %v2095, 120
        %v2111 = vadd.s32 %v2095, 128
        %v2112 = vadd.s32 %v2095, 136
        %v2113 = vadd.s32 %v2095, 144
        %v2114 = vadd.s32 %v2095, 152
        %v2115 = vadd.s32 %v2095, 160
        %v2116 = vadd.s32 %v2095, 168
        %v2117 = vadd.s32 %v2095, 176
        %v2118 = vadd.s32 %v2095, 184
        %v2119 = vadd.s32 %v2095, 192
        %v2120 = vadd.s32 %v2095, 200
        %v2121 = vadd.s32 %v2095, 208
        %v2122 = vadd.s32 %v2095, 216
        %v2123 = vadd.s32 %v2095, 224
        %v2124 = vadd.s32 %v2095, 232
        %v2125 = vadd.s32 %v2095, 240
        %v2126 = vadd.s32 %v2095, 248
        %v2127 = vstv %s2093
        %v2128 = vadd.s32 %v2127, %v2095
        %v2129 = vadd.s32 %v2127, %v2096
        %v2130 = vadd.s32 %v2127, %v2097
        %v2131 = vadd.s32 %v2127, %v2098
        %v2132 = vadd.s32 %v2127, %v2099
        %v2133 = vadd.s32 %v2127, %v2100
        %v2134 = vadd.s32 %v2127, %v2101
        %v2135 = vadd.s32 %v2127, %v2102
        %v2136 = vadd.s32 %v2127, %v2103
        %v2137 = vadd.s32 %v2127, %v2104
        %v2138 = vadd.s32 %v2127, %v2105
        %v2139 = vadd.s32 %v2127, %v2106
        %v2140 = vadd.s32 %v2127, %v2107
        %v2141 = vadd.s32 %v2127, %v2108
        %v2142 = vadd.s32 %v2127, %v2109
        %v2143 = vadd.s32 %v2127, %v2110
        %v2144 = vadd.s32 %v2127, %v2111
        %v2145 = vadd.s32 %v2127, %v2112
        %v2146 = vadd.s32 %v2127, %v2113
        %v2147 = vadd.s32 %v2127, %v2114
        %v2148 = vadd.s32 %v2127, %v2115
        %v2149 = vadd.s32 %v2127, %v2116
        %v2150 = vadd.s32 %v2127, %v2117
        %v2151 = vadd.s32 %v2127, %v2118
        %v2152 = vadd.s32 %v2127, %v2119
        %v2153 = vadd.s32 %v2127, %v2120
        %v2154 = vadd.s32 %v2127, %v2121
        %v2155 = vadd.s32 %v2127, %v2122
        %v2156 = vadd.s32 %v2127, %v2123
        %v2157 = vadd.s32 %v2127, %v2124
        %v2158 = vadd.s32 %v2127, %v2125
        %v2159 = vadd.s32 %v2127, %v2126
        %vm2160 = vcmp.lt.s32.totalorder %v2128, 500
        %vm2161 = vcmp.lt.s32.totalorder %v2129, 500
        %vm2162 = vcmp.lt.s32.totalorder %v2130, 500
        %vm2163 = vcmp.lt.s32.totalorder %v2131, 500
        %vm2164 = vcmp.lt.s32.totalorder %v2132, 500
        %vm2165 = vcmp.lt.s32.totalorder %v2133, 500
        %vm2166 = vcmp.lt.s32.totalorder %v2134, 500
        %vm2167 = vcmp.lt.s32.totalorder %v2135, 500
        %vm2168 = vcmp.lt.s32.totalorder %v2136, 500
        %vm2169 = vcmp.lt.s32.totalorder %v2137, 500
        %vm2170 = vcmp.lt.s32.totalorder %v2138, 500
        %vm2171 = vcmp.lt.s32.totalorder %v2139, 500
        %vm2172 = vcmp.lt.s32.totalorder %v2140, 500
        %vm2173 = vcmp.lt.s32.totalorder %v2141, 500
        %vm2174 = vcmp.lt.s32.totalorder %v2142, 500
        %vm2175 = vcmp.lt.s32.totalorder %v2143, 500
        %vm2176 = vcmp.lt.s32.totalorder %v2144, 500
        %vm2177 = vcmp.lt.s32.totalorder %v2145, 500
        %vm2178 = vcmp.lt.s32.totalorder %v2146, 500
        %vm2179 = vcmp.lt.s32.totalorder %v2147, 500
        %vm2180 = vcmp.lt.s32.totalorder %v2148, 500
        %vm2181 = vcmp.lt.s32.totalorder %v2149, 500
        %vm2182 = vcmp.lt.s32.totalorder %v2150, 500
        %vm2183 = vcmp.lt.s32.totalorder %v2151, 500
        %vm2184 = vcmp.lt.s32.totalorder %v2152, 500
        %vm2185 = vcmp.lt.s32.totalorder %v2153, 500
        %vm2186 = vcmp.lt.s32.totalorder %v2154, 500
        %vm2187 = vcmp.lt.s32.totalorder %v2155, 500
        %vm2188 = vcmp.lt.s32.totalorder %v2156, 500
        %vm2189 = vcmp.lt.s32.totalorder %v2157, 500
        %vm2190 = vcmp.lt.s32.totalorder %v2158, 500
        %vm2191 = vcmp.lt.s32.totalorder %v2159, 500
        %v2192 = vsel %vm2160, %v2060, 0.0
        %v2193 = vsel %vm2161, %v2061, 0.0
        %v2194 = vsel %vm2162, %v2062, 0.0
        %v2195 = vsel %vm2163, %v2063, 0.0
        %v2196 = vsel %vm2164, %v2064, 0.0
        %v2197 = vsel %vm2165, %v2065, 0.0
        %v2198 = vsel %vm2166, %v2066, 0.0
        %v2199 = vsel %vm2167, %v2067, 0.0
        %v2200 = vsel %vm2168, %v2068, 0.0
        %v2201 = vsel %vm2169, %v2069, 0.0
        %v2202 = vsel %vm2170, %v2070, 0.0
        %v2203 = vsel %vm2171, %v2071, 0.0
        %v2204 = vsel %vm2172, %v2072, 0.0
        %v2205 = vsel %vm2173, %v2073, 0.0
        %v2206 = vsel %vm2174, %v2074, 0.0
        %v2207 = vsel %vm2175, %v2075, 0.0
        %v2208 = vsel %vm2176, %v2076, 0.0
        %v2209 = vsel %vm2177, %v2077, 0.0
        %v2210 = vsel %vm2178, %v2078, 0.0
        %v2211 = vsel %vm2179, %v2079, 0.0
        %v2212 = vsel %vm2180, %v2080, 0.0
        %v2213 = vsel %vm2181, %v2081, 0.0
        %v2214 = vsel %vm2182, %v2082, 0.0
        %v2215 = vsel %vm2183, %v2083, 0.0
        %v2216 = vsel %vm2184, %v2084, 0.0
        %v2217 = vsel %vm2185, %v2085, 0.0
        %v2218 = vsel %vm2186, %v2086, 0.0
        %v2219 = vsel %vm2187, %v2087, 0.0
        %v2220 = vsel %vm2188, %v2088, 0.0
        %v2221 = vsel %vm2189, %v2089, 0.0
        %v2222 = vsel %vm2190, %v2090, 0.0
        %v2223 = vsel %vm2191, %v2091, 0.0
        %v2224 = vld [vmem:[#allocation2] sm:$0x1]
        %vm2225 = vcmask 7168
        %v2226 = vsel %vm2225, %v2192, 0.0
        %v2227 = vsel %vm2225, %v2193, 0.0
        %v2228 = vadd.f32 %v2226, %v2227
        %v2229 = vsel %vm2225, %v2194, 0.0
        %v2230 = vadd.f32 %v2228, %v2229
        %v2231 = vsel %vm2225, %v2195, 0.0
        %v2232 = vadd.f32 %v2230, %v2231
        %v2233 = vsel %vm2225, %v2196, 0.0
        %v2234 = vadd.f32 %v2232, %v2233
        %v2235 = vsel %vm2225, %v2197, 0.0
        %v2236 = vadd.f32 %v2234, %v2235
        %v2237 = vsel %vm2225, %v2198, 0.0
        %v2238 = vadd.f32 %v2236, %v2237
        %v2239 = vsel %vm2225, %v2199, 0.0
        %v2240 = vadd.f32 %v2238, %v2239
        %v2241 = vsel %vm2225, %v2200, 0.0
        %v2242 = vadd.f32 %v2240, %v2241
        %v2243 = vsel %vm2225, %v2201, 0.0
        %v2244 = vadd.f32 %v2242, %v2243
        %v2245 = vsel %vm2225, %v2202, 0.0
        %v2246 = vadd.f32 %v2244, %v2245
        %v2247 = vsel %vm2225, %v2203, 0.0
        %v2248 = vadd.f32 %v2246, %v2247
        %v2249 = vsel %vm2225, %v2204, 0.0
        %v2250 = vadd.f32 %v2248, %v2249
        %v2251 = vsel %vm2225, %v2205, 0.0
        %v2252 = vadd.f32 %v2250, %v2251
        %v2253 = vsel %vm2225, %v2206, 0.0
        %v2254 = vadd.f32 %v2252, %v2253
        %v2255 = vsel %vm2225, %v2207, 0.0
        %v2256 = vadd.f32 %v2254, %v2255
        %v2257 = vsel %vm2225, %v2208, 0.0
        %v2258 = vadd.f32 %v2256, %v2257
        %v2259 = vsel %vm2225, %v2209, 0.0
        %v2260 = vadd.f32 %v2258, %v2259
        %v2261 = vsel %vm2225, %v2210, 0.0
        %v2262 = vadd.f32 %v2260, %v2261
        %v2263 = vsel %vm2225, %v2211, 0.0
        %v2264 = vadd.f32 %v2262, %v2263
        %v2265 = vsel %vm2225, %v2212, 0.0
        %v2266 = vadd.f32 %v2264, %v2265
        %v2267 = vsel %vm2225, %v2213, 0.0
        %v2268 = vadd.f32 %v2266, %v2267
        %v2269 = vsel %vm2225, %v2214, 0.0
        %v2270 = vadd.f32 %v2268, %v2269
        %v2271 = vsel %vm2225, %v2215, 0.0
        %v2272 = vadd.f32 %v2270, %v2271
        %v2273 = vsel %vm2225, %v2216, 0.0
        %v2274 = vadd.f32 %v2272, %v2273
        %v2275 = vsel %vm2225, %v2217, 0.0
        %v2276 = vadd.f32 %v2274, %v2275
        %v2277 = vsel %vm2225, %v2218, 0.0
        %v2278 = vadd.f32 %v2276, %v2277
        %v2279 = vsel %vm2225, %v2219, 0.0
        %v2280 = vadd.f32 %v2278, %v2279
        %v2281 = vsel %vm2225, %v2220, 0.0
        %v2282 = vadd.f32 %v2280, %v2281
        %v2283 = vsel %vm2225, %v2221, 0.0
        %v2284 = vadd.f32 %v2282, %v2283
        %v2285 = vsel %vm2225, %v2222, 0.0
        %v2286 = vadd.f32 %v2284, %v2285
        %v2287 = vsel %vm2225, %v2223, 0.0
        %v2288 = vadd.f32 %v2286, %v2287
        %2289 = vadd.xlane.f32.xlu0 %v2288
        %v2290 = vpop.xlane.xlu0 %2289
        %v2291 = vrot.slane %v2290, 4
        %v2292 = vadd.f32 %v2290, %v2291
        %v2293 = vrot.slane %v2292, 2
        %v2294 = vadd.f32 %v2292, %v2293
        %v2295 = vrot.slane %v2294, 1
        %v2296 = vadd.f32 %v2294, %v2295
        %s2297 = vtos %v2296
        %v2298 = vstv %s2297
        %v2299 = vadd.f32 %v2224, %v2298
        %vm2300 = vcmask 0
        %2301 = vst.msk [vmem:[#allocation2] sm:$0x1] %vm2300, %v2299
        // Predicated region
        $region73: #{tpu_custom_call.1} parent=43 // pred_check
          %p2302 = pneg %p518
        $region74: #{tpu_custom_call.1} parent=43 // pred_check_branch
          %2304 = sbr.rel (%p2302) target = $region76
        $region75: #{tpu_custom_call.1} parent=43 // pred_region
          %v2305 = vld [vmem:[#allocation2] sm:$0x1]
          %v2306 = vmul.f32 %v2305, 0.002
          %v2308 = vperm.slane %v2306, 0
          %2309 = vset.pattern.permute.xlu0 0
          %2310 = vperm.xlu0 %2309, %v2308
          %v2311 = vpop.permute.xlu0 %2310
          %2313 = vst [vmem:[%s505] sm:$0xff] %v2311
        $region76: #{tpu_custom_call.1} parent=43 // pred_fallthru
          _
        %s2314 = sand.u32 %s220, 1
        %s2315 = scalar_lea.sflag [#allocation5], %s2314
        %s2316 = sand.u32 %s220, 1
        %s2317 = smul.addr %s2316, 8
        %s2318 = scalar_lea.vmem [#allocation14], %s2317
        // Predicated region
        $region77: #{tpu_custom_call.1} parent=43 // pred_check
          %p2319 = pneg %p230
        $region78: #{tpu_custom_call.1} parent=43 // pred_check_branch
          %2321 = sbr.rel (%p2319) target = $region80
        $region79: #{tpu_custom_call.1} parent=43 // pred_region
          %2323 = vsyncadd %s2315, 0
          %s2324 = smul.addr %s36, 8
          %s2325 = scalar_lea.hbm %s6, %s2324
          %s2327 = sshll.u32 %s2318, 4
          %s2328 = int_to_ptr.vmem [resolvable:$true] %s2327
          %s2329 = sshll.u32 %s2325, 4
          %s2330 = int_to_ptr.hbm [resolvable:$true] %s2329
          %2332 = dma.vmem_to_hbm [thread:$0]  %s2328, 128, %s2330, %s2315
        $region80: #{tpu_custom_call.1} parent=43 // pred_fallthru
          _
      $region44: #{tpu_custom_call.1} parent=5 // pred_fallthru
        _
      %p2333 = scmp.le.s32.totalorder 2, %s27
      // Predicated region
      $region81: #{tpu_custom_call.1} parent=5 // pred_check
        %p2334 = pneg %p2333
      $region82: #{tpu_custom_call.1} parent=5 // pred_check_branch
        %2336 = sbr.rel (%p2334) target = $region84
      $region83: #{tpu_custom_call.1} parent=5 // pred_region
        %s2337 = ssub.s32 %s27, 2
        // Predicated region
        $region85: #{tpu_custom_call.1} parent=83 // pred_check
          %p2338 = pneg %p236
        $region86: #{tpu_custom_call.1} parent=83 // pred_check_branch
          %2340 = sbr.rel (%p2338) target = $region88
        $region87: #{tpu_custom_call.1} parent=83 // pred_region
          %s2341 = sand.u32 %s221, 1
          %s2342 = scalar_lea.sflag [#allocation5], %s2341
          %s2343 = sand.u32 %s221, 1
          %s2344 = smul.addr %s2343, 8
          %s2345 = scalar_lea.vmem [#allocation14], %s2344
          %2347 = dma.done %s2342, 128
        $region88: #{tpu_custom_call.1} parent=83 // pred_fallthru
          _
      $region84: #{tpu_custom_call.1} parent=5 // pred_fallthru
        _
    $region6: #{tpu_custom_call.1} parent=1 // loop_footer
      %s31 = sadd.s32 1, %s27
    $region7: #{tpu_custom_call.1} parent=1 // loop_footer_branch
      %26 = sbr.rel target = $region3
    $region8: #{tpu_custom_call.1} parent=1 // loop_exit
      _
    %2348 = vsyncpa [#allocation4], 1
    %s2349 = scalar_lea.sflag [#allocation4], 1
    %2350 = vsyncpa %s2349, 1
    %2351 = vsyncpa [#allocation7], 1
    %s2352 = scalar_lea.sflag [#allocation7], 1
    %2353 = vsyncpa %s2352, 1
    %2354 = vsyncpa [#allocation10], 1
    %s2355 = scalar_lea.sflag [#allocation10], 1
    %2356 = vsyncpa %s2355, 1
    %2357 = vsyncpa [#allocation13], 1
    %s2358 = scalar_lea.sflag [#allocation13], 1
    %2359 = vsyncpa %s2358, 1
    %2360 = vsyncpa [#allocation5], 1
    %s2361 = scalar_lea.sflag [#allocation5], 1
    %2362 = vsyncpa %s2361, 1

</llo_original>
